<compile_context>
chip_gen: v5e
topology: v5e:2x2
jax: 0.10.0
libtpu: 0.0.40
codegen_flags: <defaults>
</compile_context>

<pallas_src>
import jax
import jax.numpy as jnp
import numpy as np
from jax.experimental import pallas as pl
from jax.experimental.pallas import tpu as pltpu


# --------------------------------------------------------------------------
# Fused kernel: edge nn + L NNConv layers (+ReLU) + accumulated global max
# pool + MLP head.  Graph structure arrives as small lane-major int32 rows.
# --------------------------------------------------------------------------
def mpnn_fused_kernel(src_ref, dst_ref, batch_ref,            # (1,E), (1,E), (1,N) int32
                      x0_ref, ea_ref,                          # (N,H), (E,F) f32
                      nn_w1_ref, nn_b1_ref,                    # (F,F), (1,F)
                      w2r_ref, fold_ref,                       # (H,(F+1)*H), ((F+1)*H,H)
                      roots_ref, biases_ref,                   # (L,H,H), (L,1,H)
                      l1w_ref, l1b_ref, l2w_ref, l2b_ref,      # (H,H),(1,H),(1,H),(1,1)
                      out_ref,                                 # (G,1)
                      lhs_sc, rhs_sc):                         # (N,E+H), (E+H,H) f32 scratch
    E, F = ea_ref.shape
    N, H = x0_ref.shape
    G = out_ref.shape[0]
    L = roots_ref.shape[0]
    FA = F + 1                                # bias-augmented edge-feature dim
    f32 = jnp.float32

    # -------------------- one-time work (hoisted) --------------------------
    # Shared edge network, hidden layer only (2nd layer is folded into w2r).
    h1 = jnp.maximum(
        jnp.dot(ea_ref[...], nn_w1_ref[...], preferred_element_type=f32)
        + nn_b1_ref[...], 0.0)                                            # (E, F)

    # h1 augmented with a ones column (absorbs the 2nd edge-net bias) and
    # replicated to lane width H ONCE (FA lane-broadcasts total, outside the
    # layer loop):  h1rep[e, f*H + k] == h1_aug[e, f].
    lane_ones = jnp.ones((1, H), f32)
    h1rep = jnp.concatenate(
        [h1[:, f:f + 1] * lane_ones for f in range(F)]
        + [jnp.ones((E, H), f32)], axis=1)                                # (E, FA*H)

    # Gather / scatter one-hot operators in f32 (exact).  Built from the
    # lane-major index rows; only src needs one tiny hoisted int relayout.
    src_col = src_ref[...].reshape(E, 1)                                  # (E,1)
    Ssrc = (jax.lax.broadcasted_iota(jnp.int32, (E, N), 1)
            == src_col).astype(f32)                                       # (E,N)
    SdstT = (jax.lax.broadcasted_iota(jnp.int32, (N, E), 0)
             == dst_ref[...]).astype(f32)                                 # (N,E)

    # Constant scatter block of the fused [scatter | root] LHS, written once.
    lhs_sc[:, 0:E] = SdstT

    # Per-graph membership masks for the max pool, hoisted (no (G,N,H) temp).
    bat_col = batch_ref[...].reshape(N, 1)                                # (N,1) int32
    gmask = [bat_col == g for g in range(G)]                              # G x (N,1) bool

    x = x0_ref[...]                                                       # (N,H) f32
    gf = [jnp.zeros((1, H), f32) for _ in range(G)]

    # -------------------- message-passing layers ---------------------------
    # Each body is ~5 MXU calls + one elementwise multiply; no per-step lane
    # slices/broadcasts remain, so the static L-unroll stays tiny.
    for l in range(L):
        # gather source-node features on the MXU (f32): x[src] == Ssrc @ x
        x_src = jnp.dot(Ssrc, x, preferred_element_type=f32)              # (E,H)

        # per-edge matmul, factored through the edge network (all lane-dense):
        #   U[e, f*H+k]   = sum_h x_src[e,h] * w2_aug[f, h*H+k]
        #   msg[e, k]     = sum_f h1_aug[e,f] * U[e, f*H+k]
        u = jnp.dot(x_src, w2r_ref[...], preferred_element_type=f32)      # (E, FA*H)
        msg = jnp.dot(h1rep * u, fold_ref[...],
                      preferred_element_type=f32)                         # (E, H)

        # fused scatter-add + root transform:  [SdstT | x] @ [msg ; W_root_l]
        lhs_sc[:, E:E + H] = x
        rhs_sc[0:E, :] = msg
        rhs_sc[E:E + H, :] = roots_ref[l]
        x = jnp.maximum(
            jnp.dot(lhs_sc[...], rhs_sc[...], preferred_element_type=f32)
            + biases_ref[l], 0.0)                                         # (N,H)

        # accumulated global max pool, per graph
        # TODO(synk): with sorted batch at production scale, replace by
        # scalar-prefetched per-graph slice maxes (no select at all).
        for g in range(G):
            gf[g] = gf[g] + jnp.max(jnp.where(gmask[g], x, -1e30),
                                    axis=0, keepdims=True)                # (1,H)

    # -------------------- head ----------------------------------------------
    gfa = jnp.concatenate(gf, axis=0)                                     # (G,H)
    t = jnp.maximum(
        jnp.dot(gfa, l1w_ref[...], preferred_element_type=f32)
        + l1b_ref[...], 0.0)
    # final 1-wide projection on the VPU (multiply + lane reduce) instead of a
    # 1-column MXU matmul
    out_ref[...] = jnp.sum(t * l2w_ref[...], axis=1, keepdims=True) + l2b_ref[...]


# --------------------------------------------------------------------------
# Wrapper
# --------------------------------------------------------------------------
def mpnn_forward(node_ids, edge_index, edge_attr, batch, params, num_graphs):
    N = node_ids.shape[0]
    E, F = edge_attr.shape
    H = params["emb"].shape[1]
    L = params["roots"].shape[0]
    G = num_graphs
    FA = F + 1

    # glue (XLA side): embedding lookup + lane-major index rows
    x0 = params["emb"][node_ids]                                          # (N,H)
    src_row = edge_index[0].astype(jnp.int32).reshape(1, E)
    dst_row = edge_index[1].astype(jnp.int32).reshape(1, E)
    batch_row = batch.astype(jnp.int32).reshape(1, N)

    # Weight-only rearrangements (done once, outside the kernel):
    #  * 2nd edge-net layer augmented with its bias row and re-laid-out to
    #    (H, FA*H) so the per-edge contraction becomes two plain MXU matmuls.
    #  * constant 0/1 "fold" matrix summing the FA chunks back to H lanes.
    w2_aug = jnp.concatenate([params["nn_w2"], params["nn_b2"][None, :]],
                             axis=0)                                      # (FA, H*H)
    w2r = w2_aug.reshape(FA, H, H).transpose(1, 0, 2).reshape(H, FA * H)  # (H, FA*H)
    fold = jnp.tile(jnp.eye(H, dtype=jnp.float32), (FA, 1))               # (FA*H, H)

    vmem = pl.BlockSpec(memory_space=pltpu.MemorySpace.VMEM)

    flops = int(2 * E * F * F
                + L * (2 * E * N * H + 2 * E * H * FA * H + E * FA * H
                       + 2 * E * FA * H * H + 2 * N * (E + H) * H)
                + 2 * G * H * H + 2 * G * H)
    bytes_accessed = int(4 * (2 * E + N + N * H + E * F + F * F + F
                              + H * FA * H + FA * H * H
                              + L * H * H + L * H + H * H + 3 * H + 1 + G))
    cost = pl.CostEstimate(flops=flops, transcendentals=0,
                           bytes_accessed=bytes_accessed)

    # VMEM budget: size from the actual working set with headroom, capped by
    # the device's reported capacity (64 MiB on v7x, 128 MiB on v5e/v6e).
    est = 4 * (4 * N * H + 2 * E * N + 4 * E * FA * H + N * (E + H)
               + (E + H) * H + 2 * E * F + H * FA * H + FA * H * H
               + L * H * H + 4096)
    try:
        phys = pltpu.get_tpu_info().vmem_capacity_bytes
    except Exception:
        phys = 64 * 1024 * 1024
    vmem_limit = int(min(max(32 * 1024 * 1024, 2 * est), int(0.75 * phys)))

    out = pl.pallas_call(
        mpnn_fused_kernel,
        out_shape=jax.ShapeDtypeStruct((G, 1), jnp.float32),
        in_specs=[vmem] * 15,
        out_specs=vmem,
        scratch_shapes=[pltpu.VMEM((N, E + H), jnp.float32),
                        pltpu.VMEM((E + H, H), jnp.float32)],
        compiler_params=pltpu.CompilerParams(vmem_limit_bytes=vmem_limit),
        cost_estimate=cost,
    )(
        src_row, dst_row, batch_row,
        x0, edge_attr,
        params["nn_w1"], params["nn_b1"].reshape(1, -1),
        w2r, fold,
        params["roots"], params["biases"].reshape(L, 1, H),
        params["lin1_w"], params["lin1_b"].reshape(1, -1),
        params["lin2_w"].reshape(1, H), params["lin2_b"].reshape(1, 1),
    )
    return out.squeeze()


# --------------------------------------------------------------------------
# Pure-JAX reference (mirrors the PyTorch / PyG semantics, full f32)
# --------------------------------------------------------------------------
def mpnn_reference(node_ids, edge_index, edge_attr, batch, params, num_graphs):
    N = node_ids.shape[0]
    E = edge_attr.shape[0]
    H = params["emb"].shape[1]
    L = params["roots"].shape[0]
    G = num_graphs
    src, dst = edge_index[0], edge_index[1]

    x = params["emb"][node_ids]
    h = jax.nn.relu(edge_attr @ params["nn_w1"] + params["nn_b1"])
    We = (h @ params["nn_w2"] + params["nn_b2"]).reshape(E, H, H)

    mask = (batch[None, :] == jnp.arange(G)[:, None])
    gf = jnp.zeros((G, H), jnp.float32)
    for l in range(L):
        msg = jnp.einsum("eh,ehk->ek", x[src], We)
        agg = jnp.zeros((N, H), jnp.float32).at[dst].add(msg)
        x = jax.nn.relu(agg + x @ params["roots"][l] + params["biases"][l])
        masked = jnp.where(mask[:, :, None], x[None, :, :], -1e30)
        gf = gf + jnp.max(masked, axis=1)
    t = jax.nn.relu(gf @ params["lin1_w"] + params["lin1_b"])
    return (t @ params["lin2_w"] + params["lin2_b"]).squeeze()


# --------------------------------------------------------------------------
# Deterministic parameter init
# --------------------------------------------------------------------------
def init_params(key, H, F, L):
    ks = jax.random.split(key, 12)
    s = 0.1
    return {
        "emb": 0.5 * jax.random.normal(ks[0], (100, H), jnp.float32),
        # shared edge nn (one instance, reused by every NNConv layer)
        "nn_w1": s * jax.random.normal(ks[1], (F, F), jnp.float32),
        "nn_b1": s * jax.random.normal(ks[2], (F,), jnp.float32),
        "nn_w2": s * jax.random.normal(ks[3], (F, H * H), jnp.float32),
        "nn_b2": s * jax.random.normal(ks[4], (H * H,), jnp.float32),
        # per-layer NNConv root weights / biases
        "roots": s * jax.random.normal(ks[5], (L, H, H), jnp.float32),
        "biases": s * jax.random.normal(ks[6], (L, H), jnp.float32),
        # head
        "lin1_w": s * jax.random.normal(ks[7], (H, H), jnp.float32),
        "lin1_b": s * jax.random.normal(ks[8], (H,), jnp.float32),
        "lin2_w": s * jax.random.normal(ks[9], (H, 1), jnp.float32),
        "lin2_b": s * jax.random.normal(ks[10], (1,), jnp.float32),
    }
    # TODO(synk): BatchNorm1d / Dropout exist in __init__ but are unused in forward -> not implemented.


if __name__ == "__main__":
    N, E, H, F, G, L = 16, 32, 32, 8, 2, 3  # nodes, edges, hidden, edge feats, graphs, layers

    key = jax.random.PRNGKey(0)
    k_ids, k_src, k_dst, k_ea, k_par = jax.random.split(key, 5)

    node_ids = jax.random.randint(k_ids, (N,), 0, 100, dtype=jnp.int32)   # data.x
    src = jax.random.randint(k_src, (E,), 0, N, dtype=jnp.int32)
    dst = jax.random.randint(k_dst, (E,), 0, N, dtype=jnp.int32)
    edge_index = jnp.stack([src, dst], axis=0)                            # data.edge_index (2, E)
    edge_attr = jax.random.normal(k_ea, (E, F), jnp.float32)              # data.edge_attr
    batch = jnp.concatenate([jnp.zeros(N // 2, jnp.int32),
                             jnp.ones(N - N // 2, jnp.int32)])            # data.batch

    params = init_params(k_par, H, F, L)

    out = mpnn_forward(node_ids, edge_index, edge_attr, batch, params, G)
    out = jax.block_until_ready(out)

    ref = mpnn_reference(node_ids, edge_index, edge_attr, batch, params, G)
    ref = jax.block_until_ready(ref)

    assert out.shape == (G,), f"unexpected output shape {out.shape}"
    # kernel math is f32 end-to-end now; tolerance only covers MXU pass
    # decomposition / XLA default matmul precision in the reference.
    np.testing.assert_allclose(np.asarray(out), np.asarray(ref), rtol=2e-2, atol=2e-2)
    print("KERNEL_OK")
</pallas_src>

<mosaic_0001>
module attributes {stable_mosaic.version = 11 : i64} {
  func.func @mpnn_fused_kernel(%arg0: memref<1x32xi32, #tpu.memory_space<vmem>>, %arg1: memref<1x32xi32, #tpu.memory_space<vmem>>, %arg2: memref<1x16xi32, #tpu.memory_space<vmem>>, %arg3: memref<16x32xf32, #tpu.memory_space<vmem>>, %arg4: memref<32x8xf32, #tpu.memory_space<vmem>>, %arg5: memref<8x8xf32, #tpu.memory_space<vmem>>, %arg6: memref<1x8xf32, #tpu.memory_space<vmem>>, %arg7: memref<32x288xf32, #tpu.memory_space<vmem>>, %arg8: memref<288x32xf32, #tpu.memory_space<vmem>>, %arg9: memref<3x32x32xf32, #tpu.memory_space<vmem>>, %arg10: memref<3x1x32xf32, #tpu.memory_space<vmem>>, %arg11: memref<32x32xf32, #tpu.memory_space<vmem>>, %arg12: memref<1x32xf32, #tpu.memory_space<vmem>>, %arg13: memref<1x32xf32, #tpu.memory_space<vmem>>, %arg14: memref<1x1xf32, #tpu.memory_space<vmem>>, %arg15: memref<2x1xf32, #tpu.memory_space<vmem>>, %arg16: memref<16x64xf32, #tpu.memory_space<vmem>>, %arg17: memref<64x32xf32, #tpu.memory_space<vmem>>) attributes {dimension_semantics = [], scalar_prefetch = 0 : i64, scratch_operands = 2 : i64, tpu.core_type = #tpu.core_type<tc>} {
    %c0 = arith.constant 0 : index
    %c0_0 = arith.constant 0 : index
    %0 = vector.load %arg4[%c0, %c0_0] : memref<32x8xf32, #tpu.memory_space<vmem>>, vector<32x8xf32>
    %c0_1 = arith.constant 0 : index
    %c0_2 = arith.constant 0 : index
    %1 = vector.load %arg5[%c0_1, %c0_2] : memref<8x8xf32, #tpu.memory_space<vmem>>, vector<8x8xf32>
    %cst = arith.constant dense<0.000000e+00> : vector<32x8xf32>
    %2 = tpu.matmul %0, %1, %cst {dimension_numbers = #tpu.dot_dimension_numbers<[1], [0], [0], [1], [0, 0, 1, 1], [], []>} : vector<32x8xf32>, vector<8x8xf32>, vector<32x8xf32> -> vector<32x8xf32>
    %c0_3 = arith.constant 0 : index
    %c0_4 = arith.constant 0 : index
    %3 = vector.load %arg6[%c0_3, %c0_4] : memref<1x8xf32, #tpu.memory_space<vmem>>, vector<1x8xf32>
    %4 = vector.broadcast %3 : vector<1x8xf32> to vector<32x8xf32>
    %5 = arith.addf %2, %4 : vector<32x8xf32>
    %cst_5 = arith.constant 0.000000e+00 : f32
    %6 = vector.broadcast %cst_5 : f32 to vector<32x8xf32>
    %7 = arith.maximumf %5, %6 : vector<32x8xf32>
    %cst_6 = arith.constant 1.000000e+00 : f32
    %8 = vector.broadcast %cst_6 : f32 to vector<1x32xf32>
    %9 = vector.extract_strided_slice %7 {offsets = [0, 0], sizes = [32, 1], strides = [1, 1]} : vector<32x8xf32> to vector<32x1xf32>
    %10 = vector.broadcast %9 : vector<32x1xf32> to vector<32x32xf32>
    %11 = vector.broadcast %8 : vector<1x32xf32> to vector<32x32xf32>
    %12 = arith.mulf %10, %11 : vector<32x32xf32>
    %13 = vector.extract_strided_slice %7 {offsets = [0, 1], sizes = [32, 1], strides = [1, 1]} : vector<32x8xf32> to vector<32x1xf32>
    %14 = vector.broadcast %13 : vector<32x1xf32> to vector<32x32xf32>
    %15 = vector.broadcast %8 : vector<1x32xf32> to vector<32x32xf32>
    %16 = arith.mulf %14, %15 : vector<32x32xf32>
    %17 = vector.extract_strided_slice %7 {offsets = [0, 2], sizes = [32, 1], strides = [1, 1]} : vector<32x8xf32> to vector<32x1xf32>
    %18 = vector.broadcast %17 : vector<32x1xf32> to vector<32x32xf32>
    %19 = vector.broadcast %8 : vector<1x32xf32> to vector<32x32xf32>
    %20 = arith.mulf %18, %19 : vector<32x32xf32>
    %21 = vector.extract_strided_slice %7 {offsets = [0, 3], sizes = [32, 1], strides = [1, 1]} : vector<32x8xf32> to vector<32x1xf32>
    %22 = vector.broadcast %21 : vector<32x1xf32> to vector<32x32xf32>
    %23 = vector.broadcast %8 : vector<1x32xf32> to vector<32x32xf32>
    %24 = arith.mulf %22, %23 : vector<32x32xf32>
    %25 = vector.extract_strided_slice %7 {offsets = [0, 4], sizes = [32, 1], strides = [1, 1]} : vector<32x8xf32> to vector<32x1xf32>
    %26 = vector.broadcast %25 : vector<32x1xf32> to vector<32x32xf32>
    %27 = vector.broadcast %8 : vector<1x32xf32> to vector<32x32xf32>
    %28 = arith.mulf %26, %27 : vector<32x32xf32>
    %29 = vector.extract_strided_slice %7 {offsets = [0, 5], sizes = [32, 1], strides = [1, 1]} : vector<32x8xf32> to vector<32x1xf32>
    %30 = vector.broadcast %29 : vector<32x1xf32> to vector<32x32xf32>
    %31 = vector.broadcast %8 : vector<1x32xf32> to vector<32x32xf32>
    %32 = arith.mulf %30, %31 : vector<32x32xf32>
    %33 = vector.extract_strided_slice %7 {offsets = [0, 6], sizes = [32, 1], strides = [1, 1]} : vector<32x8xf32> to vector<32x1xf32>
    %34 = vector.broadcast %33 : vector<32x1xf32> to vector<32x32xf32>
    %35 = vector.broadcast %8 : vector<1x32xf32> to vector<32x32xf32>
    %36 = arith.mulf %34, %35 : vector<32x32xf32>
    %37 = vector.extract_strided_slice %7 {offsets = [0, 7], sizes = [32, 1], strides = [1, 1]} : vector<32x8xf32> to vector<32x1xf32>
    %38 = vector.broadcast %37 : vector<32x1xf32> to vector<32x32xf32>
    %39 = vector.broadcast %8 : vector<1x32xf32> to vector<32x32xf32>
    %40 = arith.mulf %38, %39 : vector<32x32xf32>
    %cst_7 = arith.constant 1.000000e+00 : f32
    %41 = vector.broadcast %cst_7 : f32 to vector<32x32xf32>
    %42 = tpu.concatenate %12, %16, %20, %24, %28, %32, %36, %40, %41 in 1 : vector<32x32xf32>, vector<32x32xf32>, vector<32x32xf32>, vector<32x32xf32>, vector<32x32xf32>, vector<32x32xf32>, vector<32x32xf32>, vector<32x32xf32>, vector<32x32xf32> -> vector<32x288xf32>
    %c0_8 = arith.constant 0 : index
    %c0_9 = arith.constant 0 : index
    %43 = vector.load %arg0[%c0_8, %c0_9] : memref<1x32xi32, #tpu.memory_space<vmem>>, vector<1x32xi32>
    %44 = vector.shape_cast %43 : vector<1x32xi32> to vector<32x1xi32>
    %45 = tpu.iota {dimensions = array<i32: 1>} : vector<32x16xi32>
    %46 = vector.broadcast %44 : vector<32x1xi32> to vector<32x16xi32>
    %47 = arith.cmpi eq, %45, %46 : vector<32x16xi32>
    %48 = arith.extui %47 : vector<32x16xi1> to vector<32x16xi32>
    %49 = arith.sitofp %48 : vector<32x16xi32> to vector<32x16xf32>
    %50 = tpu.iota {dimensions = array<i32: 0>} : vector<16x32xi32>
    %c0_10 = arith.constant 0 : index
    %c0_11 = arith.constant 0 : index
    %51 = vector.load %arg1[%c0_10, %c0_11] : memref<1x32xi32, #tpu.memory_space<vmem>>, vector<1x32xi32>
    %52 = vector.broadcast %51 : vector<1x32xi32> to vector<16x32xi32>
    %53 = arith.cmpi eq, %50, %52 : vector<16x32xi32>
    %54 = arith.extui %53 : vector<16x32xi1> to vector<16x32xi32>
    %55 = arith.sitofp %54 : vector<16x32xi32> to vector<16x32xf32>
    %c0_12 = arith.constant 0 : index
    %c0_13 = arith.constant 0 : index
    %56 = vector.load %arg16[%c0_12, %c0_13] : memref<16x64xf32, #tpu.memory_space<vmem>>, vector<16x32xf32>
    tpu.vector_store %arg16[%c0_12, %c0_13], %55 {strides = array<i32>} : memref<16x64xf32, #tpu.memory_space<vmem>>, vector<16x32xf32>,
    %c0_14 = arith.constant 0 : index
    %c0_15 = arith.constant 0 : index
    %57 = vector.load %arg2[%c0_14, %c0_15] : memref<1x16xi32, #tpu.memory_space<vmem>>, vector<1x16xi32>
    %58 = vector.shape_cast %57 : vector<1x16xi32> to vector<16x1xi32>
    %c0_i32 = arith.constant 0 : i32
    %59 = vector.broadcast %c0_i32 : i32 to vector<16x1xi32>
    %60 = arith.cmpi eq, %58, %59 : vector<16x1xi32>
    %c1_i32 = arith.constant 1 : i32
    %61 = vector.broadcast %c1_i32 : i32 to vector<16x1xi32>
    %62 = arith.cmpi eq, %58, %61 : vector<16x1xi32>
    %c0_16 = arith.constant 0 : index
    %c0_17 = arith.constant 0 : index
    %63 = vector.load %arg3[%c0_16, %c0_17] : memref<16x32xf32, #tpu.memory_space<vmem>>, vector<16x32xf32>
    %cst_18 = arith.constant 0.000000e+00 : f32
    %64 = vector.broadcast %cst_18 : f32 to vector<1x32xf32>
    %cst_19 = arith.constant 0.000000e+00 : f32
    %65 = vector.broadcast %cst_19 : f32 to vector<1x32xf32>
    %cst_20 = arith.constant dense<0.000000e+00> : vector<32x32xf32>
    %66 = tpu.matmul %49, %63, %cst_20 {dimension_numbers = #tpu.dot_dimension_numbers<[1], [0], [0], [1], [0, 0, 1, 1], [], []>} : vector<32x16xf32>, vector<16x32xf32>, vector<32x32xf32> -> vector<32x32xf32>
    %c0_21 = arith.constant 0 : index
    %c0_22 = arith.constant 0 : index
    %67 = vector.load %arg7[%c0_21, %c0_22] : memref<32x288xf32, #tpu.memory_space<vmem>>, vector<32x288xf32>
    %cst_23 = arith.constant dense<0.000000e+00> : vector<32x288xf32>
    %68 = tpu.matmul %66, %67, %cst_23 {dimension_numbers = #tpu.dot_dimension_numbers<[1], [0], [0], [1], [0, 0, 1, 1], [], []>} : vector<32x32xf32>, vector<32x288xf32>, vector<32x288xf32> -> vector<32x288xf32>
    %69 = arith.mulf %42, %68 : vector<32x288xf32>
    %c0_24 = arith.constant 0 : index
    %c0_25 = arith.constant 0 : index
    %70 = vector.load %arg8[%c0_24, %c0_25] : memref<288x32xf32, #tpu.memory_space<vmem>>, vector<288x32xf32>
    %cst_26 = arith.constant dense<0.000000e+00> : vector<32x32xf32>
    %71 = tpu.matmul %69, %70, %cst_26 {dimension_numbers = #tpu.dot_dimension_numbers<[1], [0], [0], [1], [0, 0, 1, 1], [], []>} : vector<32x288xf32>, vector<288x32xf32>, vector<32x32xf32> -> vector<32x32xf32>
    %c0_27 = arith.constant 0 : index
    %c32 = arith.constant 32 : index
    %72 = vector.load %arg16[%c0_27, %c32] : memref<16x64xf32, #tpu.memory_space<vmem>>, vector<16x32xf32>
    tpu.vector_store %arg16[%c0_27, %c32], %63 {strides = array<i32>} : memref<16x64xf32, #tpu.memory_space<vmem>>, vector<16x32xf32>,
    %c0_28 = arith.constant 0 : index
    %c0_29 = arith.constant 0 : index
    %73 = vector.load %arg17[%c0_28, %c0_29] : memref<64x32xf32, #tpu.memory_space<vmem>>, vector<32x32xf32>
    tpu.vector_store %arg17[%c0_28, %c0_29], %71 {strides = array<i32>} : memref<64x32xf32, #tpu.memory_space<vmem>>, vector<32x32xf32>,
    %c0_30 = arith.constant 0 : index
    %c0_31 = arith.constant 0 : index
    %c0_32 = arith.constant 0 : index
    %74 = vector.load %arg9[%c0_30, %c0_31, %c0_32] : memref<3x32x32xf32, #tpu.memory_space<vmem>>, vector<1x32x32xf32>
    %75 = vector.shape_cast %74 : vector<1x32x32xf32> to vector<32x32xf32>
    %c32_33 = arith.constant 32 : index
    %c0_34 = arith.constant 0 : index
    %76 = vector.load %arg17[%c32_33, %c0_34] : memref<64x32xf32, #tpu.memory_space<vmem>>, vector<32x32xf32>
    tpu.vector_store %arg17[%c32_33, %c0_34], %75 {strides = array<i32>} : memref<64x32xf32, #tpu.memory_space<vmem>>, vector<32x32xf32>,
    %c0_35 = arith.constant 0 : index
    %c0_36 = arith.constant 0 : index
    %77 = vector.load %arg16[%c0_35, %c0_36] : memref<16x64xf32, #tpu.memory_space<vmem>>, vector<16x64xf32>
    %c0_37 = arith.constant 0 : index
    %c0_38 = arith.constant 0 : index
    %78 = vector.load %arg17[%c0_37, %c0_38] : memref<64x32xf32, #tpu.memory_space<vmem>>, vector<64x32xf32>
    %cst_39 = arith.constant dense<0.000000e+00> : vector<16x32xf32>
    %79 = tpu.matmul %77, %78, %cst_39 {dimension_numbers = #tpu.dot_dimension_numbers<[1], [0], [0], [1], [0, 0, 1, 1], [], []>} : vector<16x64xf32>, vector<64x32xf32>, vector<16x32xf32> -> vector<16x32xf32>
    %c0_40 = arith.constant 0 : index
    %c0_41 = arith.constant 0 : index
    %c0_42 = arith.constant 0 : index
    %80 = vector.load %arg10[%c0_40, %c0_41, %c0_42] : memref<3x1x32xf32, #tpu.memory_space<vmem>>, vector<1x1x32xf32>
    %81 = vector.shape_cast %80 : vector<1x1x32xf32> to vector<1x32xf32>
    %82 = vector.broadcast %81 : vector<1x32xf32> to vector<16x32xf32>
    %83 = arith.addf %79, %82 : vector<16x32xf32>
    %cst_43 = arith.constant 0.000000e+00 : f32
    %84 = vector.broadcast %cst_43 : f32 to vector<16x32xf32>
    %85 = arith.maximumf %83, %84 : vector<16x32xf32>
    %cst_44 = arith.constant -1.000000e+30 : f32
    %86 = vector.shape_cast %60 : vector<16x1xi1> to vector<16x1xi1>
    %87 = vector.broadcast %86 : vector<16x1xi1> to vector<16x32xi1>
    %88 = vector.broadcast %cst_44 : f32 to vector<16x32xf32>
    %89 = arith.select %87, %85, %88 : vector<16x32xi1>, vector<16x32xf32>
    %cst_45 = arith.constant dense<0xFF800000> : vector<32xf32>
    %90 = vector.multi_reduction <maximumf>, %89, %cst_45 [0] : vector<16x32xf32> to vector<32xf32>
    %91 = vector.shape_cast %90 : vector<32xf32> to vector<1x32xf32>
    %92 = arith.addf %64, %91 : vector<1x32xf32>
    %cst_46 = arith.constant -1.000000e+30 : f32
    %93 = vector.shape_cast %62 : vector<16x1xi1> to vector<16x1xi1>
    %94 = vector.broadcast %93 : vector<16x1xi1> to vector<16x32xi1>
    %95 = vector.broadcast %cst_46 : f32 to vector<16x32xf32>
    %96 = arith.select %94, %85, %95 : vector<16x32xi1>, vector<16x32xf32>
    %cst_47 = arith.constant dense<0xFF800000> : vector<32xf32>
    %97 = vector.multi_reduction <maximumf>, %96, %cst_47 [0] : vector<16x32xf32> to vector<32xf32>
    %98 = vector.shape_cast %97 : vector<32xf32> to vector<1x32xf32>
    %99 = arith.addf %65, %98 : vector<1x32xf32>
    %cst_48 = arith.constant dense<0.000000e+00> : vector<32x32xf32>
    %100 = tpu.matmul %49, %85, %cst_48 {dimension_numbers = #tpu.dot_dimension_numbers<[1], [0], [0], [1], [0, 0, 1, 1], [], []>} : vector<32x16xf32>, vector<16x32xf32>, vector<32x32xf32> -> vector<32x32xf32>
    %c0_49 = arith.constant 0 : index
    %c0_50 = arith.constant 0 : index
    %101 = vector.load %arg7[%c0_49, %c0_50] : memref<32x288xf32, #tpu.memory_space<vmem>>, vector<32x288xf32>
    %cst_51 = arith.constant dense<0.000000e+00> : vector<32x288xf32>
    %102 = tpu.matmul %100, %101, %cst_51 {dimension_numbers = #tpu.dot_dimension_numbers<[1], [0], [0], [1], [0, 0, 1, 1], [], []>} : vector<32x32xf32>, vector<32x288xf32>, vector<32x288xf32> -> vector<32x288xf32>
    %103 = arith.mulf %42, %102 : vector<32x288xf32>
    %c0_52 = arith.constant 0 : index
    %c0_53 = arith.constant 0 : index
    %104 = vector.load %arg8[%c0_52, %c0_53] : memref<288x32xf32, #tpu.memory_space<vmem>>, vector<288x32xf32>
    %cst_54 = arith.constant dense<0.000000e+00> : vector<32x32xf32>
    %105 = tpu.matmul %103, %104, %cst_54 {dimension_numbers = #tpu.dot_dimension_numbers<[1], [0], [0], [1], [0, 0, 1, 1], [], []>} : vector<32x288xf32>, vector<288x32xf32>, vector<32x32xf32> -> vector<32x32xf32>
    %c0_55 = arith.constant 0 : index
    %c32_56 = arith.constant 32 : index
    %106 = vector.load %arg16[%c0_55, %c32_56] : memref<16x64xf32, #tpu.memory_space<vmem>>, vector<16x32xf32>
    tpu.vector_store %arg16[%c0_55, %c32_56], %85 {strides = array<i32>} : memref<16x64xf32, #tpu.memory_space<vmem>>, vector<16x32xf32>,
    %c0_57 = arith.constant 0 : index
    %c0_58 = arith.constant 0 : index
    %107 = vector.load %arg17[%c0_57, %c0_58] : memref<64x32xf32, #tpu.memory_space<vmem>>, vector<32x32xf32>
    tpu.vector_store %arg17[%c0_57, %c0_58], %105 {strides = array<i32>} : memref<64x32xf32, #tpu.memory_space<vmem>>, vector<32x32xf32>,
    %c1 = arith.constant 1 : index
    %c0_59 = arith.constant 0 : index
    %c0_60 = arith.constant 0 : index
    %108 = vector.load %arg9[%c1, %c0_59, %c0_60] : memref<3x32x32xf32, #tpu.memory_space<vmem>>, vector<1x32x32xf32>
    %109 = vector.shape_cast %108 : vector<1x32x32xf32> to vector<32x32xf32>
    %c32_61 = arith.constant 32 : index
    %c0_62 = arith.constant 0 : index
    %110 = vector.load %arg17[%c32_61, %c0_62] : memref<64x32xf32, #tpu.memory_space<vmem>>, vector<32x32xf32>
    tpu.vector_store %arg17[%c32_61, %c0_62], %109 {strides = array<i32>} : memref<64x32xf32, #tpu.memory_space<vmem>>, vector<32x32xf32>,
    %c0_63 = arith.constant 0 : index
    %c0_64 = arith.constant 0 : index
    %111 = vector.load %arg16[%c0_63, %c0_64] : memref<16x64xf32, #tpu.memory_space<vmem>>, vector<16x64xf32>
    %c0_65 = arith.constant 0 : index
    %c0_66 = arith.constant 0 : index
    %112 = vector.load %arg17[%c0_65, %c0_66] : memref<64x32xf32, #tpu.memory_space<vmem>>, vector<64x32xf32>
    %cst_67 = arith.constant dense<0.000000e+00> : vector<16x32xf32>
    %113 = tpu.matmul %111, %112, %cst_67 {dimension_numbers = #tpu.dot_dimension_numbers<[1], [0], [0], [1], [0, 0, 1, 1], [], []>} : vector<16x64xf32>, vector<64x32xf32>, vector<16x32xf32> -> vector<16x32xf32>
    %c1_68 = arith.constant 1 : index
    %c0_69 = arith.constant 0 : index
    %c0_70 = arith.constant 0 : index
    %114 = vector.load %arg10[%c1_68, %c0_69, %c0_70] : memref<3x1x32xf32, #tpu.memory_space<vmem>>, vector<1x1x32xf32>
    %115 = vector.shape_cast %114 : vector<1x1x32xf32> to vector<1x32xf32>
    %116 = vector.broadcast %115 : vector<1x32xf32> to vector<16x32xf32>
    %117 = arith.addf %113, %116 : vector<16x32xf32>
    %cst_71 = arith.constant 0.000000e+00 : f32
    %118 = vector.broadcast %cst_71 : f32 to vector<16x32xf32>
    %119 = arith.maximumf %117, %118 : vector<16x32xf32>
    %cst_72 = arith.constant -1.000000e+30 : f32
    %120 = vector.shape_cast %60 : vector<16x1xi1> to vector<16x1xi1>
    %121 = vector.broadcast %120 : vector<16x1xi1> to vector<16x32xi1>
    %122 = vector.broadcast %cst_72 : f32 to vector<16x32xf32>
    %123 = arith.select %121, %119, %122 : vector<16x32xi1>, vector<16x32xf32>
    %cst_73 = arith.constant dense<0xFF800000> : vector<32xf32>
    %124 = vector.multi_reduction <maximumf>, %123, %cst_73 [0] : vector<16x32xf32> to vector<32xf32>
    %125 = vector.shape_cast %124 : vector<32xf32> to vector<1x32xf32>
    %126 = arith.addf %92, %125 : vector<1x32xf32>
    %cst_74 = arith.constant -1.000000e+30 : f32
    %127 = vector.shape_cast %62 : vector<16x1xi1> to vector<16x1xi1>
    %128 = vector.broadcast %127 : vector<16x1xi1> to vector<16x32xi1>
    %129 = vector.broadcast %cst_74 : f32 to vector<16x32xf32>
    %130 = arith.select %128, %119, %129 : vector<16x32xi1>, vector<16x32xf32>
    %cst_75 = arith.constant dense<0xFF800000> : vector<32xf32>
    %131 = vector.multi_reduction <maximumf>, %130, %cst_75 [0] : vector<16x32xf32> to vector<32xf32>
    %132 = vector.shape_cast %131 : vector<32xf32> to vector<1x32xf32>
    %133 = arith.addf %99, %132 : vector<1x32xf32>
    %cst_76 = arith.constant dense<0.000000e+00> : vector<32x32xf32>
    %134 = tpu.matmul %49, %119, %cst_76 {dimension_numbers = #tpu.dot_dimension_numbers<[1], [0], [0], [1], [0, 0, 1, 1], [], []>} : vector<32x16xf32>, vector<16x32xf32>, vector<32x32xf32> -> vector<32x32xf32>
    %c0_77 = arith.constant 0 : index
    %c0_78 = arith.constant 0 : index
    %135 = vector.load %arg7[%c0_77, %c0_78] : memref<32x288xf32, #tpu.memory_space<vmem>>, vector<32x288xf32>
    %cst_79 = arith.constant dense<0.000000e+00> : vector<32x288xf32>
    %136 = tpu.matmul %134, %135, %cst_79 {dimension_numbers = #tpu.dot_dimension_numbers<[1], [0], [0], [1], [0, 0, 1, 1], [], []>} : vector<32x32xf32>, vector<32x288xf32>, vector<32x288xf32> -> vector<32x288xf32>
    %137 = arith.mulf %42, %136 : vector<32x288xf32>
    %c0_80 = arith.constant 0 : index
    %c0_81 = arith.constant 0 : index
    %138 = vector.load %arg8[%c0_80, %c0_81] : memref<288x32xf32, #tpu.memory_space<vmem>>, vector<288x32xf32>
    %cst_82 = arith.constant dense<0.000000e+00> : vector<32x32xf32>
    %139 = tpu.matmul %137, %138, %cst_82 {dimension_numbers = #tpu.dot_dimension_numbers<[1], [0], [0], [1], [0, 0, 1, 1], [], []>} : vector<32x288xf32>, vector<288x32xf32>, vector<32x32xf32> -> vector<32x32xf32>
    %c0_83 = arith.constant 0 : index
    %c32_84 = arith.constant 32 : index
    %140 = vector.load %arg16[%c0_83, %c32_84] : memref<16x64xf32, #tpu.memory_space<vmem>>, vector<16x32xf32>
    tpu.vector_store %arg16[%c0_83, %c32_84], %119 {strides = array<i32>} : memref<16x64xf32, #tpu.memory_space<vmem>>, vector<16x32xf32>,
    %c0_85 = arith.constant 0 : index
    %c0_86 = arith.constant 0 : index
    %141 = vector.load %arg17[%c0_85, %c0_86] : memref<64x32xf32, #tpu.memory_space<vmem>>, vector<32x32xf32>
    tpu.vector_store %arg17[%c0_85, %c0_86], %139 {strides = array<i32>} : memref<64x32xf32, #tpu.memory_space<vmem>>, vector<32x32xf32>,
    %c2 = arith.constant 2 : index
    %c0_87 = arith.constant 0 : index
    %c0_88 = arith.constant 0 : index
    %142 = vector.load %arg9[%c2, %c0_87, %c0_88] : memref<3x32x32xf32, #tpu.memory_space<vmem>>, vector<1x32x32xf32>
    %143 = vector.shape_cast %142 : vector<1x32x32xf32> to vector<32x32xf32>
    %c32_89 = arith.constant 32 : index
    %c0_90 = arith.constant 0 : index
    %144 = vector.load %arg17[%c32_89, %c0_90] : memref<64x32xf32, #tpu.memory_space<vmem>>, vector<32x32xf32>
    tpu.vector_store %arg17[%c32_89, %c0_90], %143 {strides = array<i32>} : memref<64x32xf32, #tpu.memory_space<vmem>>, vector<32x32xf32>,
    %c0_91 = arith.constant 0 : index
    %c0_92 = arith.constant 0 : index
    %145 = vector.load %arg16[%c0_91, %c0_92] : memref<16x64xf32, #tpu.memory_space<vmem>>, vector<16x64xf32>
    %c0_93 = arith.constant 0 : index
    %c0_94 = arith.constant 0 : index
    %146 = vector.load %arg17[%c0_93, %c0_94] : memref<64x32xf32, #tpu.memory_space<vmem>>, vector<64x32xf32>
    %cst_95 = arith.constant dense<0.000000e+00> : vector<16x32xf32>
    %147 = tpu.matmul %145, %146, %cst_95 {dimension_numbers = #tpu.dot_dimension_numbers<[1], [0], [0], [1], [0, 0, 1, 1], [], []>} : vector<16x64xf32>, vector<64x32xf32>, vector<16x32xf32> -> vector<16x32xf32>
    %c2_96 = arith.constant 2 : index
    %c0_97 = arith.constant 0 : index
    %c0_98 = arith.constant 0 : index
    %148 = vector.load %arg10[%c2_96, %c0_97, %c0_98] : memref<3x1x32xf32, #tpu.memory_space<vmem>>, vector<1x1x32xf32>
    %149 = vector.shape_cast %148 : vector<1x1x32xf32> to vector<1x32xf32>
    %150 = vector.broadcast %149 : vector<1x32xf32> to vector<16x32xf32>
    %151 = arith.addf %147, %150 : vector<16x32xf32>
    %cst_99 = arith.constant 0.000000e+00 : f32
    %152 = vector.broadcast %cst_99 : f32 to vector<16x32xf32>
    %153 = arith.maximumf %151, %152 : vector<16x32xf32>
    %cst_100 = arith.constant -1.000000e+30 : f32
    %154 = vector.shape_cast %60 : vector<16x1xi1> to vector<16x1xi1>
    %155 = vector.broadcast %154 : vector<16x1xi1> to vector<16x32xi1>
    %156 = vector.broadcast %cst_100 : f32 to vector<16x32xf32>
    %157 = arith.select %155, %153, %156 : vector<16x32xi1>, vector<16x32xf32>
    %cst_101 = arith.constant dense<0xFF800000> : vector<32xf32>
    %158 = vector.multi_reduction <maximumf>, %157, %cst_101 [0] : vector<16x32xf32> to vector<32xf32>
    %159 = vector.shape_cast %158 : vector<32xf32> to vector<1x32xf32>
    %160 = arith.addf %126, %159 : vector<1x32xf32>
    %cst_102 = arith.constant -1.000000e+30 : f32
    %161 = vector.shape_cast %62 : vector<16x1xi1> to vector<16x1xi1>
    %162 = vector.broadcast %161 : vector<16x1xi1> to vector<16x32xi1>
    %163 = vector.broadcast %cst_102 : f32 to vector<16x32xf32>
    %164 = arith.select %162, %153, %163 : vector<16x32xi1>, vector<16x32xf32>
    %cst_103 = arith.constant dense<0xFF800000> : vector<32xf32>
    %165 = vector.multi_reduction <maximumf>, %164, %cst_103 [0] : vector<16x32xf32> to vector<32xf32>
    %166 = vector.shape_cast %165 : vector<32xf32> to vector<1x32xf32>
    %167 = arith.addf %133, %166 : vector<1x32xf32>
    %168 = tpu.concatenate %160, %167 in 0 : vector<1x32xf32>, vector<1x32xf32> -> vector<2x32xf32>
    %c0_104 = arith.constant 0 : index
    %c0_105 = arith.constant 0 : index
    %169 = vector.load %arg11[%c0_104, %c0_105] : memref<32x32xf32, #tpu.memory_space<vmem>>, vector<32x32xf32>
    %cst_106 = arith.constant dense<0.000000e+00> : vector<2x32xf32>
    %170 = tpu.matmul %168, %169, %cst_106 {dimension_numbers = #tpu.dot_dimension_numbers<[1], [0], [0], [1], [0, 0, 1, 1], [], []>} : vector<2x32xf32>, vector<32x32xf32>, vector<2x32xf32> -> vector<2x32xf32>
    %c0_107 = arith.constant 0 : index
    %c0_108 = arith.constant 0 : index
    %171 = vector.load %arg12[%c0_107, %c0_108] : memref<1x32xf32, #tpu.memory_space<vmem>>, vector<1x32xf32>
    %172 = vector.broadcast %171 : vector<1x32xf32> to vector<2x32xf32>
    %173 = arith.addf %170, %172 : vector<2x32xf32>
    %cst_109 = arith.constant 0.000000e+00 : f32
    %174 = vector.broadcast %cst_109 : f32 to vector<2x32xf32>
    %175 = arith.maximumf %173, %174 : vector<2x32xf32>
    %c0_110 = arith.constant 0 : index
    %c0_111 = arith.constant 0 : index
    %176 = vector.load %arg13[%c0_110, %c0_111] : memref<1x32xf32, #tpu.memory_space<vmem>>, vector<1x32xf32>
    %177 = vector.broadcast %176 : vector<1x32xf32> to vector<2x32xf32>
    %178 = arith.mulf %175, %177 : vector<2x32xf32>
    %cst_112 = arith.constant dense<0.000000e+00> : vector<2xf32>
    %179 = vector.multi_reduction <add>, %178, %cst_112 [1] : vector<2x32xf32> to vector<2xf32>
    %180 = vector.shape_cast %179 : vector<2xf32> to vector<2x1xf32>
    %c0_113 = arith.constant 0 : index
    %c0_114 = arith.constant 0 : index
    %181 = vector.load %arg14[%c0_113, %c0_114] : memref<1x1xf32, #tpu.memory_space<vmem>>, vector<1x1xf32>
    %182 = vector.broadcast %181 : vector<1x1xf32> to vector<2x1xf32>
    %183 = arith.addf %180, %182 : vector<2x1xf32>
    %c0_115 = arith.constant 0 : index
    %c0_116 = arith.constant 0 : index
    %184 = vector.load %arg15[%c0_115, %c0_116] : memref<2x1xf32, #tpu.memory_space<vmem>>, vector<2x1xf32>
    tpu.vector_store %arg15[%c0_115, %c0_116], %183 {strides = array<i32>} : memref<2x1xf32, #tpu.memory_space<vmem>>, vector<2x1xf32>,
    return
  }
}

</mosaic_0001>

<llo_original>
// kernel: tpu_custom_call.1
$region0: #{tpu_custom_call.1}
  #allocation0 [shape = 'u32[]', space=smem, size = 0x4, offset = 0x4, fixed_abs, tag = 'smem constant byte address 0x4 - core index']
  #allocation1 [shape = 'u32[72,128]{1,0:T(1,128)}', space=vmem, size = 0x9000, scoped, tag = 'internal scratch']
  #allocation2 [shape = 'f32[16,64]{1,0:T(8,128)}', space=vmem, size = 0x2000, scoped, tag = 'scratch operand']
  #allocation3 [shape = 'f32[64,32]{1,0:T(8,128)}', space=vmem, size = 0x8000, scoped, tag = 'scratch operand']
  #allocation4 [shape = 'f32[1,1]{1,0:T(1,128)S(1)}', space=vmem, size = 0x200, scoped, tag = 'scoped memory for tpu_custom_call.1']
  %s0 = inlined_call_operand.vmem [shape: s32[1,32], index: 0, kind: input, shape index: {}]
  %s1 = inlined_call_operand.vmem [shape: s32[1,32], index: 1, kind: input, shape index: {}]
  %s2 = inlined_call_operand.vmem [shape: s32[1,16], index: 2, kind: input, shape index: {}]
  %s3 = inlined_call_operand.vmem [shape: f32[16,32], index: 3, kind: input, shape index: {}]
  %s4 = inlined_call_operand.vmem [shape: f32[32,8], index: 4, kind: input, shape index: {}]
  %s5 = inlined_call_operand.vmem [shape: f32[8,8], index: 5, kind: input, shape index: {}]
  %s6 = inlined_call_operand.vmem [shape: f32[1,8], index: 6, kind: input, shape index: {}]
  %s7 = inlined_call_operand.vmem [shape: f32[32,288], index: 7, kind: input, shape index: {}]
  %s8 = inlined_call_operand.vmem [shape: f32[288,32], index: 8, kind: input, shape index: {}]
  %s9 = inlined_call_operand.vmem [shape: f32[3,32,32], index: 9, kind: input, shape index: {}]
  %s10 = inlined_call_operand.vmem [shape: f32[3,1,32], index: 10, kind: input, shape index: {}]
  %s11 = inlined_call_operand.vmem [shape: f32[32,32], index: 11, kind: input, shape index: {}]
  %s12 = inlined_call_operand.vmem [shape: f32[1,32], index: 12, kind: input, shape index: {}]
  %s13 = inlined_call_operand.vmem [shape: f32[1,32], index: 13, kind: input, shape index: {}]
  %s14 = inlined_call_operand.<no memory space> [shape: f32[1,1], index: 14, kind: input, shape index: {}]
  %s15 = inlined_call_operand.vmem [shape: f32[2,1], index: 15, kind: output, shape index: {}]
  %s16 = sld [smem:[#allocation0]]
  $region70: #{tpu_custom_call.1} parent=0
    _
  %s18 = ssub.s32 1, %s16
  %s19 = scalar_select 0, %s18, %s16
  %v20 = vstv %s14
  %21 = vst [vmem:[#allocation4] sm:$0x1] %v20
  // Predicated region
  $region2: #{tpu_custom_call.1} parent=0 // pred_check
    _
  $region3: #{tpu_custom_call.1} parent=0 // pred_check_branch
    %23 = sbr.rel (0) target = $region5
  $region4: #{tpu_custom_call.1} parent=0 // pred_region
    _
  $region5: #{tpu_custom_call.1} parent=0 // pred_fallthru
    _
  // Predicated region
  $region6: #{tpu_custom_call.1} parent=0 // pred_check
    _
  $region7: #{tpu_custom_call.1} parent=0 // pred_check_branch
    %25 = sbr.rel (0) target = $region9
  $region8: #{tpu_custom_call.1} parent=0 // pred_region
    _
  $region9: #{tpu_custom_call.1} parent=0 // pred_fallthru
    _
  // Predicated region
  $region10: #{tpu_custom_call.1} parent=0 // pred_check
    _
  $region11: #{tpu_custom_call.1} parent=0 // pred_check_branch
    %27 = sbr.rel (0) target = $region13
  $region12: #{tpu_custom_call.1} parent=0 // pred_region
    _
  $region13: #{tpu_custom_call.1} parent=0 // pred_fallthru
    _
  // Predicated region
  $region14: #{tpu_custom_call.1} parent=0 // pred_check
    _
  $region15: #{tpu_custom_call.1} parent=0 // pred_check_branch
    %29 = sbr.rel (0) target = $region17
  $region16: #{tpu_custom_call.1} parent=0 // pred_region
    _
  $region17: #{tpu_custom_call.1} parent=0 // pred_fallthru
    _
  // Predicated region
  $region18: #{tpu_custom_call.1} parent=0 // pred_check
    _
  $region19: #{tpu_custom_call.1} parent=0 // pred_check_branch
    %31 = sbr.rel (0) target = $region21
  $region20: #{tpu_custom_call.1} parent=0 // pred_region
    _
  $region21: #{tpu_custom_call.1} parent=0 // pred_fallthru
    _
  // Predicated region
  $region22: #{tpu_custom_call.1} parent=0 // pred_check
    _
  $region23: #{tpu_custom_call.1} parent=0 // pred_check_branch
    %33 = sbr.rel (0) target = $region25
  $region24: #{tpu_custom_call.1} parent=0 // pred_region
    _
  $region25: #{tpu_custom_call.1} parent=0 // pred_fallthru
    _
  // Predicated region
  $region26: #{tpu_custom_call.1} parent=0 // pred_check
    _
  $region27: #{tpu_custom_call.1} parent=0 // pred_check_branch
    %35 = sbr.rel (0) target = $region29
  $region28: #{tpu_custom_call.1} parent=0 // pred_region
    _
  $region29: #{tpu_custom_call.1} parent=0 // pred_fallthru
    _
  // Predicated region
  $region30: #{tpu_custom_call.1} parent=0 // pred_check
    _
  $region31: #{tpu_custom_call.1} parent=0 // pred_check_branch
    %37 = sbr.rel (0) target = $region33
  $region32: #{tpu_custom_call.1} parent=0 // pred_region
    _
  $region33: #{tpu_custom_call.1} parent=0 // pred_fallthru
    _
  // Predicated region
  $region34: #{tpu_custom_call.1} parent=0 // pred_check
    _
  $region35: #{tpu_custom_call.1} parent=0 // pred_check_branch
    %39 = sbr.rel (0) target = $region37
  $region36: #{tpu_custom_call.1} parent=0 // pred_region
    _
  $region37: #{tpu_custom_call.1} parent=0 // pred_fallthru
    _
  // Predicated region
  $region38: #{tpu_custom_call.1} parent=0 // pred_check
    _
  $region39: #{tpu_custom_call.1} parent=0 // pred_check_branch
    %41 = sbr.rel (0) target = $region41
  $region40: #{tpu_custom_call.1} parent=0 // pred_region
    _
  $region41: #{tpu_custom_call.1} parent=0 // pred_fallthru
    _
  // Predicated region
  $region42: #{tpu_custom_call.1} parent=0 // pred_check
    _
  $region43: #{tpu_custom_call.1} parent=0 // pred_check_branch
    %43 = sbr.rel (0) target = $region45
  $region44: #{tpu_custom_call.1} parent=0 // pred_region
    _
  $region45: #{tpu_custom_call.1} parent=0 // pred_fallthru
    _
  // Predicated region
  $region46: #{tpu_custom_call.1} parent=0 // pred_check
    _
  $region47: #{tpu_custom_call.1} parent=0 // pred_check_branch
    %45 = sbr.rel (0) target = $region49
  $region48: #{tpu_custom_call.1} parent=0 // pred_region
    _
  $region49: #{tpu_custom_call.1} parent=0 // pred_fallthru
    _
  // Predicated region
  $region50: #{tpu_custom_call.1} parent=0 // pred_check
    _
  $region51: #{tpu_custom_call.1} parent=0 // pred_check_branch
    %47 = sbr.rel (0) target = $region53
  $region52: #{tpu_custom_call.1} parent=0 // pred_region
    _
  $region53: #{tpu_custom_call.1} parent=0 // pred_fallthru
    _
  // Predicated region
  $region54: #{tpu_custom_call.1} parent=0 // pred_check
    _
  $region55: #{tpu_custom_call.1} parent=0 // pred_check_branch
    %49 = sbr.rel (0) target = $region57
  $region56: #{tpu_custom_call.1} parent=0 // pred_region
    _
  $region57: #{tpu_custom_call.1} parent=0 // pred_fallthru
    _
  // Predicated region
  $region58: #{tpu_custom_call.1} parent=0 // pred_check
    _
  $region59: #{tpu_custom_call.1} parent=0 // pred_check_branch
    %51 = sbr.rel (0) target = $region61
  $region60: #{tpu_custom_call.1} parent=0 // pred_region
    _
  $region61: #{tpu_custom_call.1} parent=0 // pred_fallthru
    _
  %v52 = vld [vmem:[%s4] sm:$0xff]
  %v53 = vld [vmem:[%s4 + $0x8] sm:$0xff]
  %v54 = vld [vmem:[%s4 + $0x10] sm:$0xff]
  %v55 = vld [vmem:[%s4 + $0x18] sm:$0xff]
  %v56 = vld [vmem:[%s5] sm:$0xff]
  %v57 = vld [vmem:[%s6] sm:$0x1]
  %v59 = vperm.slane %v57, 0
  %vm61 = vcmask 64512
  %v63 = vsel %vm61, %v52, 0
  %v66 = vsel %vm61, %v53, 0
  %v69 = vsel %vm61, %v54, 0
  %v72 = vsel %vm61, %v55, 0
  %74 = vmatpush.msra.mxu0 0.0
  %75 = vmatpush.msra.mxu0 0.0
  %76 = vmatpush.msra.mxu0 0.0
  %77 = vmatpush.msra.mxu0 0.0
  %78 = vmatpush.msra.mxu0 0.0
  %79 = vmatpush.msra.mxu0 0.0
  %80 = vmatpush.msra.mxu0 0.0
  %81 = vmatpush.msra.mxu0 0.0
  %82 = vmatpush.msra.mxu0 0.0
  %83 = vmatpush.msra.mxu0 0.0
  %84 = vmatpush.msra.mxu0 0.0
  %85 = vmatpush.msra.mxu0 0.0
  %86 = vmatpush.msra.mxu0 0.0
  %87 = vmatpush.msra.mxu0 0.0
  %88 = vmatpush.msra.mxu0 0.0
  %89 = vmatpush.msra.mxu0 %v56
  %90 = vmatmul.f32.gmra.mxu0 %v63
  %v91 = vpop.f32.mrf.mxu0
  %v92 = vadd.f32 %v59, %v91
  %93 = vmatmul.f32.gmra.mxu0 %v66
  %v94 = vpop.f32.mrf.mxu0
  %v95 = vadd.f32 %v59, %v94
  %96 = vmatmul.f32.gmra.mxu0 %v69
  %v97 = vpop.f32.mrf.mxu0
  %v98 = vadd.f32 %v59, %v97
  %99 = vmatmul.f32.gmra.mxu0 %v72
  %v100 = vpop.f32.mrf.mxu0
  %v101 = vadd.f32 %v59, %v100
  %102 = vdwg.mxu0
  %v103 = vmax.f32 %v92, 0.0
  %v104 = vmax.f32 %v95, 0.0
  %v105 = vmax.f32 %v98, 0.0
  %v106 = vmax.f32 %v101, 0.0
  %108 = vset.pattern.permute.xlu0 0
  %109 = vperm.xlu0 %108, %v103
  %v110 = vpop.permute.xlu0 %109
  %113 = vset.pattern.permute.xlu0 0
  %114 = vperm.xlu0 %113, %v104
  %v115 = vpop.permute.xlu0 %114
  %118 = vset.pattern.permute.xlu0 0
  %119 = vperm.xlu0 %118, %v105
  %v120 = vpop.permute.xlu0 %119
  %123 = vset.pattern.permute.xlu0 0
  %124 = vperm.xlu0 %123, %v106
  %v125 = vpop.permute.xlu0 %124
  %127 = vset.pattern.permute.xlu0 1
  %128 = vperm.xlu0 %127, %v103
  %v129 = vpop.permute.xlu0 %128
  %131 = vset.pattern.permute.xlu0 1
  %132 = vperm.xlu0 %131, %v104
  %v133 = vpop.permute.xlu0 %132
  %135 = vset.pattern.permute.xlu0 1
  %136 = vperm.xlu0 %135, %v105
  %v137 = vpop.permute.xlu0 %136
  %139 = vset.pattern.permute.xlu0 1
  %140 = vperm.xlu0 %139, %v106
  %v141 = vpop.permute.xlu0 %140
  %143 = vset.pattern.permute.xlu0 2
  %144 = vperm.xlu0 %143, %v103
  %v145 = vpop.permute.xlu0 %144
  %147 = vset.pattern.permute.xlu0 2
  %148 = vperm.xlu0 %147, %v104
  %v149 = vpop.permute.xlu0 %148
  %151 = vset.pattern.permute.xlu0 2
  %152 = vperm.xlu0 %151, %v105
  %v153 = vpop.permute.xlu0 %152
  %155 = vset.pattern.permute.xlu0 2
  %156 = vperm.xlu0 %155, %v106
  %v157 = vpop.permute.xlu0 %156
  %159 = vset.pattern.permute.xlu0 3
  %160 = vperm.xlu0 %159, %v103
  %v161 = vpop.permute.xlu0 %160
  %163 = vset.pattern.permute.xlu0 3
  %164 = vperm.xlu0 %163, %v104
  %v165 = vpop.permute.xlu0 %164
  %167 = vset.pattern.permute.xlu0 3
  %168 = vperm.xlu0 %167, %v105
  %v169 = vpop.permute.xlu0 %168
  %171 = vset.pattern.permute.xlu0 3
  %172 = vperm.xlu0 %171, %v106
  %v173 = vpop.permute.xlu0 %172
  %175 = vset.pattern.permute.xlu0 4
  %176 = vperm.xlu0 %175, %v103
  %v177 = vpop.permute.xlu0 %176
  %179 = vset.pattern.permute.xlu0 4
  %180 = vperm.xlu0 %179, %v104
  %v181 = vpop.permute.xlu0 %180
  %183 = vset.pattern.permute.xlu0 4
  %184 = vperm.xlu0 %183, %v105
  %v185 = vpop.permute.xlu0 %184
  %187 = vset.pattern.permute.xlu0 4
  %188 = vperm.xlu0 %187, %v106
  %v189 = vpop.permute.xlu0 %188
  %191 = vset.pattern.permute.xlu0 5
  %192 = vperm.xlu0 %191, %v103
  %v193 = vpop.permute.xlu0 %192
  %195 = vset.pattern.permute.xlu0 5
  %196 = vperm.xlu0 %195, %v104
  %v197 = vpop.permute.xlu0 %196
  %199 = vset.pattern.permute.xlu0 5
  %200 = vperm.xlu0 %199, %v105
  %v201 = vpop.permute.xlu0 %200
  %203 = vset.pattern.permute.xlu0 5
  %204 = vperm.xlu0 %203, %v106
  %v205 = vpop.permute.xlu0 %204
  %207 = vset.pattern.permute.xlu0 6
  %208 = vperm.xlu0 %207, %v103
  %v209 = vpop.permute.xlu0 %208
  %211 = vset.pattern.permute.xlu0 6
  %212 = vperm.xlu0 %211, %v104
  %v213 = vpop.permute.xlu0 %212
  %215 = vset.pattern.permute.xlu0 6
  %216 = vperm.xlu0 %215, %v105
  %v217 = vpop.permute.xlu0 %216
  %219 = vset.pattern.permute.xlu0 6
  %220 = vperm.xlu0 %219, %v106
  %v221 = vpop.permute.xlu0 %220
  %223 = vset.pattern.permute.xlu0 7
  %224 = vperm.xlu0 %223, %v103
  %v225 = vpop.permute.xlu0 %224
  %227 = vset.pattern.permute.xlu0 7
  %228 = vperm.xlu0 %227, %v104
  %v229 = vpop.permute.xlu0 %228
  %231 = vset.pattern.permute.xlu0 7
  %232 = vperm.xlu0 %231, %v105
  %v233 = vpop.permute.xlu0 %232
  %235 = vset.pattern.permute.xlu0 7
  %236 = vperm.xlu0 %235, %v106
  %v237 = vpop.permute.xlu0 %236
  %vm239 = vcmask 261120
  %v240 = vsel %vm239, %v110, %v129
  %v241 = vsel %vm239, %v115, %v133
  %v242 = vsel %vm239, %v120, %v137
  %v243 = vsel %vm239, %v125, %v141
  %vm244 = vcmask 523264
  %v245 = vsel %vm244, %v240, %v145
  %v246 = vsel %vm244, %v241, %v149
  %v247 = vsel %vm244, %v242, %v153
  %v248 = vsel %vm244, %v243, %v157
  %vm249 = vcmask 785408
  %v250 = vsel %vm249, %v245, %v161
  %v251 = vsel %vm249, %v246, %v165
  %v252 = vsel %vm249, %v247, %v169
  %v253 = vsel %vm249, %v248, %v173
  %v254 = vsel %vm239, %v177, %v193
  %v255 = vsel %vm239, %v181, %v197
  %v256 = vsel %vm239, %v185, %v201
  %v257 = vsel %vm239, %v189, %v205
  %v258 = vsel %vm244, %v254, %v209
  %v259 = vsel %vm244, %v255, %v213
  %v260 = vsel %vm244, %v256, %v217
  %v261 = vsel %vm244, %v257, %v221
  %v262 = vsel %vm249, %v258, %v225
  %v263 = vsel %vm249, %v259, %v229
  %v264 = vsel %vm249, %v260, %v233
  %v265 = vsel %vm249, %v261, %v237
  %v266 = vld [vmem:[%s0] sm:$0x1]
  %v267 = vperm.slane %v266, 0
  %v268 = vlaneseq
  %v269 = vshrl.u32 %v268, 7
  %271 = vset.pattern.permute.xlu0 %v269
  %272 = vperm.xlu0 %271, %v267
  %v273 = vpop.permute.xlu0 %272
  %v274 = vlaneseq
  %v275 = vshrl.u32 %v274, 7
  %v276 = vadd.s32 %v275, 8
  %277 = vset.pattern.permute.xlu0 %v276
  %278 = vperm.xlu0 %277, %v267
  %v279 = vpop.permute.xlu0 %278
  %v280 = vlaneseq
  %v281 = vshrl.u32 %v280, 7
  %v282 = vadd.s32 %v281, 16
  %283 = vset.pattern.permute.xlu0 %v282
  %284 = vperm.xlu0 %283, %v267
  %v285 = vpop.permute.xlu0 %284
  %v286 = vlaneseq
  %v287 = vshrl.u32 %v286, 7
  %v288 = vadd.s32 %v287, 24
  %289 = vset.pattern.permute.xlu0 %v288
  %290 = vperm.xlu0 %289, %v267
  %v291 = vpop.permute.xlu0 %290
  %v292 = vlaneseq
  %v293 = vand.u32 %v292, 127
  %vm294 = vcmp.eq.s32.totalorder %v293, %v273
  %vm295 = vcmp.eq.s32.totalorder %v293, %v279
  %vm296 = vcmp.eq.s32.totalorder %v293, %v285
  %vm297 = vcmp.eq.s32.totalorder %v293, %v291
  %v298 = vsel %vm294, 1, 0
  %v299 = vsel %vm295, 1, 0
  %v300 = vsel %vm296, 1, 0
  %v301 = vsel %vm297, 1, 0
  %v302 = vcvt.s32.f32 %v298
  %v303 = vcvt.s32.f32 %v299
  %v304 = vcvt.s32.f32 %v300
  %v305 = vcvt.s32.f32 %v301
  %v306 = vlaneseq
  %v307 = vshrl.u32 %v306, 7
  %v308 = vadd.s32 %v307, 8
  %v309 = vld [vmem:[%s1] sm:$0x1]
  %v310 = vperm.slane %v309, 0
  %vm311 = vcmp.eq.s32.totalorder %v307, %v310
  %vm312 = vcmp.eq.s32.totalorder %v308, %v310
  %v313 = vsel %vm311, 1, 0
  %v314 = vsel %vm312, 1, 0
  %v315 = vcvt.s32.f32 %v313
  %v316 = vcvt.s32.f32 %v314
  %317 = vst.msk [vmem:[#allocation2] sm:$0xff] %vm239, %v315
  %318 = vst.msk [vmem:[#allocation2 + $0x8] sm:$0xff] %vm239, %v316
  %v319 = vld [vmem:[%s2] sm:$0x1]
  %v320 = vperm.slane %v319, 0
  %v321 = vlaneseq
  %v322 = vshrl.u32 %v321, 7
  %324 = vset.pattern.permute.xlu0 %v322
  %325 = vperm.xlu0 %324, %v320
  %v326 = vpop.permute.xlu0 %325
  %v327 = vlaneseq
  %v328 = vshrl.u32 %v327, 7
  %v329 = vadd.s32 %v328, 8
  %330 = vset.pattern.permute.xlu0 %v329
  %331 = vperm.xlu0 %330, %v320
  %v332 = vpop.permute.xlu0 %331
  %vm333 = vcmp.eq.s32.totalorder %v326, 0
  %vm334 = vcmp.eq.s32.totalorder %v332, 0
  %vm335 = vcmp.eq.s32.totalorder %v326, 1
  %vm336 = vcmp.eq.s32.totalorder %v332, 1
  %v337 = vld [vmem:[%s3] sm:$0xff]
  %v338 = vld [vmem:[%s3 + $0x8] sm:$0xff]
  %vm339 = vcmask 130048
  %v341 = vsel %vm339, %v302, 0
  %v344 = vsel %vm339, %v303, 0
  %v347 = vsel %vm339, %v304, 0
  %v350 = vsel %vm339, %v305, 0
  %352 = vmatpush.msra.mxu0 0.0
  %353 = vmatpush.msra.mxu0 0.0
  %354 = vmatpush.msra.mxu0 0.0
  %355 = vmatpush.msra.mxu0 0.0
  %356 = vmatpush.msra.mxu0 0.0
  %357 = vmatpush.msra.mxu0 0.0
  %358 = vmatpush.msra.mxu0 0.0
  %359 = vmatpush.msra.mxu0 0.0
  %360 = vmatpush.msra.mxu0 0.0
  %361 = vmatpush.msra.mxu0 0.0
  %362 = vmatpush.msra.mxu0 0.0
  %363 = vmatpush.msra.mxu0 0.0
  %364 = vmatpush.msra.mxu0 0.0
  %365 = vmatpush.msra.mxu0 0.0
  %366 = vmatpush.msra.mxu0 %v338
  %367 = vmatpush.msra.mxu0 %v337
  %368 = vmatmul.f32.gmra.mxu0 %v341
  %v369 = vpop.f32.mrf.mxu0
  %v370 = vadd.f32 0.0, %v369
  %371 = vmatmul.f32.gmra.mxu0 %v344
  %v372 = vpop.f32.mrf.mxu0
  %v373 = vadd.f32 0.0, %v372
  %374 = vmatmul.f32.gmra.mxu0 %v347
  %v375 = vpop.f32.mrf.mxu0
  %v376 = vadd.f32 0.0, %v375
  %377 = vmatmul.f32.gmra.mxu0 %v350
  %v378 = vpop.f32.mrf.mxu0
  %v379 = vadd.f32 0.0, %v378
  %380 = vdwg.mxu0
  %v381 = vld [vmem:[%s7] sm:$0xff]
  %v382 = vld [vmem:[%s7 + $0x8] sm:$0xff]
  %v383 = vld [vmem:[%s7 + $0x10] sm:$0xff]
  %v384 = vld [vmem:[%s7 + $0x18] sm:$0xff]
  %v385 = vld [vmem:[%s7 + $0x20] sm:$0xff]
  %v386 = vld [vmem:[%s7 + $0x28] sm:$0xff]
  %v387 = vld [vmem:[%s7 + $0x30] sm:$0xff]
  %v388 = vld [vmem:[%s7 + $0x38] sm:$0xff]
  %v389 = vld [vmem:[%s7 + $0x40] sm:$0xff]
  %v390 = vld [vmem:[%s7 + $0x48] sm:$0xff]
  %v391 = vld [vmem:[%s7 + $0x50] sm:$0xff]
  %v392 = vld [vmem:[%s7 + $0x58] sm:$0xff]
  %v394 = vsel %vm239, %v370, 0
  %v397 = vsel %vm239, %v373, 0
  %v400 = vsel %vm239, %v376, 0
  %v403 = vsel %vm239, %v379, 0
  %405 = vmatpush.msra.mxu0 0.0
  %406 = vmatpush.msra.mxu0 0.0
  %407 = vmatpush.msra.mxu0 0.0
  %408 = vmatpush.msra.mxu0 0.0
  %409 = vmatpush.msra.mxu0 0.0
  %410 = vmatpush.msra.mxu0 0.0
  %411 = vmatpush.msra.mxu0 0.0
  %412 = vmatpush.msra.mxu0 0.0
  %413 = vmatpush.msra.mxu0 0.0
  %414 = vmatpush.msra.mxu0 0.0
  %415 = vmatpush.msra.mxu0 0.0
  %416 = vmatpush.msra.mxu0 0.0
  %417 = vmatpush.msra.mxu0 %v390
  %418 = vmatpush.msra.mxu0 %v387
  %419 = vmatpush.msra.mxu0 %v384
  %420 = vmatpush.msra.mxu0 %v381
  %421 = vmatmul.f32.gmra.mxu0 %v394
  %v422 = vpop.f32.mrf.mxu0
  %v423 = vadd.f32 0.0, %v422
  %424 = vmatmul.f32.gmra.mxu0 %v397
  %v425 = vpop.f32.mrf.mxu0
  %v426 = vadd.f32 0.0, %v425
  %427 = vmatmul.f32.gmra.mxu0 %v400
  %v428 = vpop.f32.mrf.mxu0
  %v429 = vadd.f32 0.0, %v428
  %430 = vmatmul.f32.gmra.mxu0 %v403
  %v431 = vpop.f32.mrf.mxu0
  %v432 = vadd.f32 0.0, %v431
  %433 = vdwg.mxu0
  %434 = vmatpush.msra.mxu0 0.0
  %435 = vmatpush.msra.mxu0 0.0
  %436 = vmatpush.msra.mxu0 0.0
  %437 = vmatpush.msra.mxu0 0.0
  %438 = vmatpush.msra.mxu0 0.0
  %439 = vmatpush.msra.mxu0 0.0
  %440 = vmatpush.msra.mxu0 0.0
  %441 = vmatpush.msra.mxu0 0.0
  %442 = vmatpush.msra.mxu0 0.0
  %443 = vmatpush.msra.mxu0 0.0
  %444 = vmatpush.msra.mxu0 0.0
  %445 = vmatpush.msra.mxu0 0.0
  %446 = vmatpush.msra.mxu0 %v391
  %447 = vmatpush.msra.mxu0 %v388
  %448 = vmatpush.msra.mxu0 %v385
  %449 = vmatpush.msra.mxu0 %v382
  %450 = vmatmul.f32.gmra.mxu0 %v394
  %v451 = vpop.f32.mrf.mxu0
  %v452 = vadd.f32 0.0, %v451
  %453 = vmatmul.f32.gmra.mxu0 %v397
  %v454 = vpop.f32.mrf.mxu0
  %v455 = vadd.f32 0.0, %v454
  %456 = vmatmul.f32.gmra.mxu0 %v400
  %v457 = vpop.f32.mrf.mxu0
  %v458 = vadd.f32 0.0, %v457
  %459 = vmatmul.f32.gmra.mxu0 %v403
  %v460 = vpop.f32.mrf.mxu0
  %v461 = vadd.f32 0.0, %v460
  %462 = vdwg.mxu0
  %463 = vmatpush.msra.mxu0 0.0
  %464 = vmatpush.msra.mxu0 0.0
  %465 = vmatpush.msra.mxu0 0.0
  %466 = vmatpush.msra.mxu0 0.0
  %467 = vmatpush.msra.mxu0 0.0
  %468 = vmatpush.msra.mxu0 0.0
  %469 = vmatpush.msra.mxu0 0.0
  %470 = vmatpush.msra.mxu0 0.0
  %471 = vmatpush.msra.mxu0 0.0
  %472 = vmatpush.msra.mxu0 0.0
  %473 = vmatpush.msra.mxu0 0.0
  %474 = vmatpush.msra.mxu0 0.0
  %475 = vmatpush.msra.mxu0 %v392
  %476 = vmatpush.msra.mxu0 %v389
  %477 = vmatpush.msra.mxu0 %v386
  %478 = vmatpush.msra.mxu0 %v383
  %479 = vmatmul.f32.gmra.mxu0 %v394
  %v480 = vpop.f32.mrf.mxu0
  %v481 = vadd.f32 0.0, %v480
  %482 = vmatmul.f32.gmra.mxu0 %v397
  %v483 = vpop.f32.mrf.mxu0
  %v484 = vadd.f32 0.0, %v483
  %485 = vmatmul.f32.gmra.mxu0 %v400
  %v486 = vpop.f32.mrf.mxu0
  %v487 = vadd.f32 0.0, %v486
  %488 = vmatmul.f32.gmra.mxu0 %v403
  %v489 = vpop.f32.mrf.mxu0
  %v490 = vadd.f32 0.0, %v489
  %491 = vdwg.mxu0
  %v492 = vmul.f32 %v250, %v423
  %v493 = vmul.f32 %v262, %v452
  %v494 = vmul.f32 %v251, %v426
  %v495 = vmul.f32 %v263, %v455
  %v496 = vmul.f32 %v252, %v429
  %v497 = vmul.f32 %v264, %v458
  %v498 = vmul.f32 %v253, %v432
  %v499 = vmul.f32 %v265, %v461
  %v500 = vld [vmem:[%s8] sm:$0xff]
  %v501 = vld [vmem:[%s8 + $0x8] sm:$0xff]
  %v502 = vld [vmem:[%s8 + $0x10] sm:$0xff]
  %v503 = vld [vmem:[%s8 + $0x18] sm:$0xff]
  %v504 = vld [vmem:[%s8 + $0x20] sm:$0xff]
  %v505 = vld [vmem:[%s8 + $0x28] sm:$0xff]
  %v506 = vld [vmem:[%s8 + $0x30] sm:$0xff]
  %v507 = vld [vmem:[%s8 + $0x38] sm:$0xff]
  %v508 = vld [vmem:[%s8 + $0x40] sm:$0xff]
  %v509 = vld [vmem:[%s8 + $0x48] sm:$0xff]
  %v510 = vld [vmem:[%s8 + $0x50] sm:$0xff]
  %v511 = vld [vmem:[%s8 + $0x58] sm:$0xff]
  %v512 = vld [vmem:[%s8 + $0x60] sm:$0xff]
  %v513 = vld [vmem:[%s8 + $0x68] sm:$0xff]
  %v514 = vld [vmem:[%s8 + $0x70] sm:$0xff]
  %v515 = vld [vmem:[%s8 + $0x78] sm:$0xff]
  %v516 = vld [vmem:[%s8 + $0x80] sm:$0xff]
  %v517 = vld [vmem:[%s8 + $0x88] sm:$0xff]
  %v518 = vld [vmem:[%s8 + $0x90] sm:$0xff]
  %v519 = vld [vmem:[%s8 + $0x98] sm:$0xff]
  %v520 = vld [vmem:[%s8 + $0xa0] sm:$0xff]
  %v521 = vld [vmem:[%s8 + $0xa8] sm:$0xff]
  %v522 = vld [vmem:[%s8 + $0xb0] sm:$0xff]
  %v523 = vld [vmem:[%s8 + $0xb8] sm:$0xff]
  %v524 = vld [vmem:[%s8 + $0xc0] sm:$0xff]
  %v525 = vld [vmem:[%s8 + $0xc8] sm:$0xff]
  %v526 = vld [vmem:[%s8 + $0xd0] sm:$0xff]
  %v527 = vld [vmem:[%s8 + $0xd8] sm:$0xff]
  %v528 = vld [vmem:[%s8 + $0xe0] sm:$0xff]
  %v529 = vld [vmem:[%s8 + $0xe8] sm:$0xff]
  %v530 = vld [vmem:[%s8 + $0xf0] sm:$0xff]
  %v531 = vld [vmem:[%s8 + $0xf8] sm:$0xff]
  %v532 = vld [vmem:[%s8 + $0x100] sm:$0xff]
  %v533 = vld [vmem:[%s8 + $0x108] sm:$0xff]
  %v534 = vld [vmem:[%s8 + $0x110] sm:$0xff]
  %v535 = vld [vmem:[%s8 + $0x118] sm:$0xff]
  %v537 = vsel %vm239, %v481, 0
  %v540 = vsel %vm239, %v484, 0
  %v543 = vsel %vm239, %v487, 0
  %v546 = vsel %vm239, %v490, 0
  %548 = vmatpush.msra.mxu0 %v515
  %549 = vmatpush.msra.mxu0 %v514
  %550 = vmatpush.msra.mxu0 %v513
  %551 = vmatpush.msra.mxu0 %v512
  %552 = vmatpush.msra.mxu0 %v511
  %553 = vmatpush.msra.mxu0 %v510
  %554 = vmatpush.msra.mxu0 %v509
  %555 = vmatpush.msra.mxu0 %v508
  %556 = vmatpush.msra.mxu0 %v507
  %557 = vmatpush.msra.mxu0 %v506
  %558 = vmatpush.msra.mxu0 %v505
  %559 = vmatpush.msra.mxu0 %v504
  %560 = vmatpush.msra.mxu0 %v503
  %561 = vmatpush.msra.mxu0 %v502
  %562 = vmatpush.msra.mxu0 %v501
  %563 = vmatpush.msra.mxu0 %v500
  %564 = vmatmul.f32.gmra.mxu0 %v492
  %v565 = vpop.f32.mrf.mxu0
  %v566 = vadd.f32 0.0, %v565
  %567 = vmatmul.f32.gmra.mxu0 %v494
  %v568 = vpop.f32.mrf.mxu0
  %v569 = vadd.f32 0.0, %v568
  %570 = vmatmul.f32.gmra.mxu0 %v496
  %v571 = vpop.f32.mrf.mxu0
  %v572 = vadd.f32 0.0, %v571
  %573 = vmatmul.f32.gmra.mxu0 %v498
  %v574 = vpop.f32.mrf.mxu0
  %v575 = vadd.f32 0.0, %v574
  %576 = vdwg.mxu0
  %577 = vmatpush.msra.mxu0 %v531
  %578 = vmatpush.msra.mxu0 %v530
  %579 = vmatpush.msra.mxu0 %v529
  %580 = vmatpush.msra.mxu0 %v528
  %581 = vmatpush.msra.mxu0 %v527
  %582 = vmatpush.msra.mxu0 %v526
  %583 = vmatpush.msra.mxu0 %v525
  %584 = vmatpush.msra.mxu0 %v524
  %585 = vmatpush.msra.mxu0 %v523
  %586 = vmatpush.msra.mxu0 %v522
  %587 = vmatpush.msra.mxu0 %v521
  %588 = vmatpush.msra.mxu0 %v520
  %589 = vmatpush.msra.mxu0 %v519
  %590 = vmatpush.msra.mxu0 %v518
  %591 = vmatpush.msra.mxu0 %v517
  %592 = vmatpush.msra.mxu0 %v516
  %593 = vmatmul.f32.gmra.mxu0 %v493
  %v594 = vpop.f32.mrf.mxu0
  %v595 = vadd.f32 %v566, %v594
  %596 = vmatmul.f32.gmra.mxu0 %v495
  %v597 = vpop.f32.mrf.mxu0
  %v598 = vadd.f32 %v569, %v597
  %599 = vmatmul.f32.gmra.mxu0 %v497
  %v600 = vpop.f32.mrf.mxu0
  %v601 = vadd.f32 %v572, %v600
  %602 = vmatmul.f32.gmra.mxu0 %v499
  %v603 = vpop.f32.mrf.mxu0
  %v604 = vadd.f32 %v575, %v603
  %605 = vdwg.mxu0
  %606 = vmatpush.msra.mxu0 0.0
  %607 = vmatpush.msra.mxu0 0.0
  %608 = vmatpush.msra.mxu0 0.0
  %609 = vmatpush.msra.mxu0 0.0
  %610 = vmatpush.msra.mxu0 0.0
  %611 = vmatpush.msra.mxu0 0.0
  %612 = vmatpush.msra.mxu0 0.0
  %613 = vmatpush.msra.mxu0 0.0
  %614 = vmatpush.msra.mxu0 0.0
  %615 = vmatpush.msra.mxu0 0.0
  %616 = vmatpush.msra.mxu0 0.0
  %617 = vmatpush.msra.mxu0 0.0
  %618 = vmatpush.msra.mxu0 %v535
  %619 = vmatpush.msra.mxu0 %v534
  %620 = vmatpush.msra.mxu0 %v533
  %621 = vmatpush.msra.mxu0 %v532
  %622 = vmatmul.f32.gmra.mxu0 %v537
  %v623 = vpop.f32.mrf.mxu0
  %v624 = vadd.f32 %v595, %v623
  %625 = vmatmul.f32.gmra.mxu0 %v540
  %v626 = vpop.f32.mrf.mxu0
  %v627 = vadd.f32 %v598, %v626
  %628 = vmatmul.f32.gmra.mxu0 %v543
  %v629 = vpop.f32.mrf.mxu0
  %v630 = vadd.f32 %v601, %v629
  %631 = vmatmul.f32.gmra.mxu0 %v546
  %v632 = vpop.f32.mrf.mxu0
  %v633 = vadd.f32 %v604, %v632
  %634 = vdwg.mxu0
  %637 = vrot.lane.b32.xlu0 %v337, 32
  %v638 = vpop.permute.xlu0 %637
  %639 = vrot.lane.b32.xlu0 %v338, 32
  %v640 = vpop.permute.xlu0 %639
  %vm643 = vcmask 523520
  %644 = vst.msk [vmem:[#allocation2] sm:$0xff] %vm643, %v638
  %645 = vst.msk [vmem:[#allocation2 + $0x8] sm:$0xff] %vm643, %v640
  %646 = vst.msk [vmem:[#allocation3] sm:$0xff] %vm239, %v624
  %647 = vst.msk [vmem:[#allocation3 + $0x8] sm:$0xff] %vm239, %v627
  %648 = vst.msk [vmem:[#allocation3 + $0x10] sm:$0xff] %vm239, %v630
  %649 = vst.msk [vmem:[#allocation3 + $0x18] sm:$0xff] %vm239, %v633
  %v650 = vld [vmem:[%s9] sm:$0xff]
  %v651 = vld [vmem:[%s9 + $0x8] sm:$0xff]
  %v652 = vld [vmem:[%s9 + $0x10] sm:$0xff]
  %v653 = vld [vmem:[%s9 + $0x18] sm:$0xff]
  %654 = vst.msk [vmem:[#allocation3 + $0x20] sm:$0xff] %vm239, %v650
  %655 = vst.msk [vmem:[#allocation3 + $0x28] sm:$0xff] %vm239, %v651
  %656 = vst.msk [vmem:[#allocation3 + $0x30] sm:$0xff] %vm239, %v652
  %657 = vst.msk [vmem:[#allocation3 + $0x38] sm:$0xff] %vm239, %v653
  %v658 = vld [vmem:[#allocation2] sm:$0xff]
  %v659 = vld [vmem:[#allocation2 + $0x8] sm:$0xff]
  %v660 = vld [vmem:[#allocation3] sm:$0xff]
  %v661 = vld [vmem:[#allocation3 + $0x8] sm:$0xff]
  %v662 = vld [vmem:[#allocation3 + $0x10] sm:$0xff]
  %v663 = vld [vmem:[#allocation3 + $0x18] sm:$0xff]
  %v664 = vld [vmem:[#allocation3 + $0x20] sm:$0xff]
  %v665 = vld [vmem:[#allocation3 + $0x28] sm:$0xff]
  %v666 = vld [vmem:[#allocation3 + $0x30] sm:$0xff]
  %v667 = vld [vmem:[#allocation3 + $0x38] sm:$0xff]
  %v668 = vld [vmem:[%s10] sm:$0x1]
  %v670 = vperm.slane %v668, 0
  %v673 = vsel %vm244, %v658, 0
  %v676 = vsel %vm244, %v659, 0
  %678 = vmatpush.msra.mxu0 0.0
  %679 = vmatpush.msra.mxu0 0.0
  %680 = vmatpush.msra.mxu0 0.0
  %681 = vmatpush.msra.mxu0 0.0
  %682 = vmatpush.msra.mxu0 0.0
  %683 = vmatpush.msra.mxu0 0.0
  %684 = vmatpush.msra.mxu0 0.0
  %685 = vmatpush.msra.mxu0 0.0
  %686 = vmatpush.msra.mxu0 %v667
  %687 = vmatpush.msra.mxu0 %v666
  %688 = vmatpush.msra.mxu0 %v665
  %689 = vmatpush.msra.mxu0 %v664
  %690 = vmatpush.msra.mxu0 %v663
  %691 = vmatpush.msra.mxu0 %v662
  %692 = vmatpush.msra.mxu0 %v661
  %693 = vmatpush.msra.mxu0 %v660
  %694 = vmatmul.f32.gmra.mxu0 %v673
  %v695 = vpop.f32.mrf.mxu0
  %v696 = vadd.f32 %v670, %v695
  %697 = vmatmul.f32.gmra.mxu0 %v676
  %v698 = vpop.f32.mrf.mxu0
  %v699 = vadd.f32 %v670, %v698
  %700 = vdwg.mxu0
  %v701 = vmax.f32 %v696, 0.0
  %v702 = vmax.f32 %v699, 0.0
  %v703 = vsel %vm333, 1, 0
  %v704 = vsel %vm334, 1, 0
  %vm705 = vcmp.eq.s32.totalorder %v703, 1
  %vm706 = vcmp.eq.s32.totalorder %v704, 1
  %v707 = vsel %vm705, %v701, -1e+30
  %v708 = vsel %vm706, %v702, -1e+30
  %v709 = vsel %vm239, %v707, -inf
  %v710 = vsel %vm239, %v708, -inf
  %v711 = vmax.f32 %v709, %v710
  %v712 = vrot.slane %v711, 4
  %v713 = vmax.f32 %v711, %v712
  %v714 = vrot.slane %v713, 2
  %v715 = vmax.f32 %v713, %v714
  %v716 = vrot.slane %v715, 1
  %v717 = vmax.f32 %v715, %v716
  %v718 = vadd.f32 %v717, 0.0
  %v719 = vsel %vm335, 1, 0
  %v720 = vsel %vm336, 1, 0
  %vm721 = vcmp.eq.s32.totalorder %v719, 1
  %vm722 = vcmp.eq.s32.totalorder %v720, 1
  %v723 = vsel %vm721, %v701, -1e+30
  %v724 = vsel %vm722, %v702, -1e+30
  %v725 = vsel %vm239, %v723, -inf
  %v726 = vsel %vm239, %v724, -inf
  %v727 = vmax.f32 %v725, %v726
  %v728 = vrot.slane %v727, 4
  %v729 = vmax.f32 %v727, %v728
  %v730 = vrot.slane %v729, 2
  %v731 = vmax.f32 %v729, %v730
  %v732 = vrot.slane %v731, 1
  %v733 = vmax.f32 %v731, %v732
  %v734 = vadd.f32 %v733, 0.0
  %735 = vmatpush.msra.mxu0 0.0
  %736 = vmatpush.msra.mxu0 0.0
  %737 = vmatpush.msra.mxu0 0.0
  %738 = vmatpush.msra.mxu0 0.0
  %739 = vmatpush.msra.mxu0 0.0
  %740 = vmatpush.msra.mxu0 0.0
  %741 = vmatpush.msra.mxu0 0.0
  %742 = vmatpush.msra.mxu0 0.0
  %743 = vmatpush.msra.mxu0 0.0
  %744 = vmatpush.msra.mxu0 0.0
  %745 = vmatpush.msra.mxu0 0.0
  %746 = vmatpush.msra.mxu0 0.0
  %747 = vmatpush.msra.mxu0 0.0
  %748 = vmatpush.msra.mxu0 0.0
  %749 = vmatpush.msra.mxu0 %v702
  %750 = vmatpush.msra.mxu0 %v701
  %751 = vmatmul.f32.gmra.mxu0 %v341
  %v752 = vpop.f32.mrf.mxu0
  %v753 = vadd.f32 0.0, %v752
  %754 = vmatmul.f32.gmra.mxu0 %v344
  %v755 = vpop.f32.mrf.mxu0
  %v756 = vadd.f32 0.0, %v755
  %757 = vmatmul.f32.gmra.mxu0 %v347
  %v758 = vpop.f32.mrf.mxu0
  %v759 = vadd.f32 0.0, %v758
  %760 = vmatmul.f32.gmra.mxu0 %v350
  %v761 = vpop.f32.mrf.mxu0
  %v762 = vadd.f32 0.0, %v761
  %763 = vdwg.mxu0
  %v764 = vld [vmem:[%s7] sm:$0xff]
  %v765 = vld [vmem:[%s7 + $0x8] sm:$0xff]
  %v766 = vld [vmem:[%s7 + $0x10] sm:$0xff]
  %v767 = vld [vmem:[%s7 + $0x18] sm:$0xff]
  %v768 = vld [vmem:[%s7 + $0x20] sm:$0xff]
  %v769 = vld [vmem:[%s7 + $0x28] sm:$0xff]
  %v770 = vld [vmem:[%s7 + $0x30] sm:$0xff]
  %v771 = vld [vmem:[%s7 + $0x38] sm:$0xff]
  %v772 = vld [vmem:[%s7 + $0x40] sm:$0xff]
  %v773 = vld [vmem:[%s7 + $0x48] sm:$0xff]
  %v774 = vld [vmem:[%s7 + $0x50] sm:$0xff]
  %v775 = vld [vmem:[%s7 + $0x58] sm:$0xff]
  %v777 = vsel %vm239, %v753, 0
  %v780 = vsel %vm239, %v756, 0
  %v783 = vsel %vm239, %v759, 0
  %v786 = vsel %vm239, %v762, 0
  %788 = vmatpush.msra.mxu0 0.0
  %789 = vmatpush.msra.mxu0 0.0
  %790 = vmatpush.msra.mxu0 0.0
  %791 = vmatpush.msra.mxu0 0.0
  %792 = vmatpush.msra.mxu0 0.0
  %793 = vmatpush.msra.mxu0 0.0
  %794 = vmatpush.msra.mxu0 0.0
  %795 = vmatpush.msra.mxu0 0.0
  %796 = vmatpush.msra.mxu0 0.0
  %797 = vmatpush.msra.mxu0 0.0
  %798 = vmatpush.msra.mxu0 0.0
  %799 = vmatpush.msra.mxu0 0.0
  %800 = vmatpush.msra.mxu0 %v773
  %801 = vmatpush.msra.mxu0 %v770
  %802 = vmatpush.msra.mxu0 %v767
  %803 = vmatpush.msra.mxu0 %v764
  %804 = vmatmul.f32.gmra.mxu0 %v777
  %v805 = vpop.f32.mrf.mxu0
  %v806 = vadd.f32 0.0, %v805
  %807 = vmatmul.f32.gmra.mxu0 %v780
  %v808 = vpop.f32.mrf.mxu0
  %v809 = vadd.f32 0.0, %v808
  %810 = vmatmul.f32.gmra.mxu0 %v783
  %v811 = vpop.f32.mrf.mxu0
  %v812 = vadd.f32 0.0, %v811
  %813 = vmatmul.f32.gmra.mxu0 %v786
  %v814 = vpop.f32.mrf.mxu0
  %v815 = vadd.f32 0.0, %v814
  %816 = vdwg.mxu0
  %817 = vmatpush.msra.mxu0 0.0
  %818 = vmatpush.msra.mxu0 0.0
  %819 = vmatpush.msra.mxu0 0.0
  %820 = vmatpush.msra.mxu0 0.0
  %821 = vmatpush.msra.mxu0 0.0
  %822 = vmatpush.msra.mxu0 0.0
  %823 = vmatpush.msra.mxu0 0.0
  %824 = vmatpush.msra.mxu0 0.0
  %825 = vmatpush.msra.mxu0 0.0
  %826 = vmatpush.msra.mxu0 0.0
  %827 = vmatpush.msra.mxu0 0.0
  %828 = vmatpush.msra.mxu0 0.0
  %829 = vmatpush.msra.mxu0 %v774
  %830 = vmatpush.msra.mxu0 %v771
  %831 = vmatpush.msra.mxu0 %v768
  %832 = vmatpush.msra.mxu0 %v765
  %833 = vmatmul.f32.gmra.mxu0 %v777
  %v834 = vpop.f32.mrf.mxu0
  %v835 = vadd.f32 0.0, %v834
  %836 = vmatmul.f32.gmra.mxu0 %v780
  %v837 = vpop.f32.mrf.mxu0
  %v838 = vadd.f32 0.0, %v837
  %839 = vmatmul.f32.gmra.mxu0 %v783
  %v840 = vpop.f32.mrf.mxu0
  %v841 = vadd.f32 0.0, %v840
  %842 = vmatmul.f32.gmra.mxu0 %v786
  %v843 = vpop.f32.mrf.mxu0
  %v844 = vadd.f32 0.0, %v843
  %845 = vdwg.mxu0
  %846 = vmatpush.msra.mxu0 0.0
  %847 = vmatpush.msra.mxu0 0.0
  %848 = vmatpush.msra.mxu0 0.0
  %849 = vmatpush.msra.mxu0 0.0
  %850 = vmatpush.msra.mxu0 0.0
  %851 = vmatpush.msra.mxu0 0.0
  %852 = vmatpush.msra.mxu0 0.0
  %853 = vmatpush.msra.mxu0 0.0
  %854 = vmatpush.msra.mxu0 0.0
  %855 = vmatpush.msra.mxu0 0.0
  %856 = vmatpush.msra.mxu0 0.0
  %857 = vmatpush.msra.mxu0 0.0
  %858 = vmatpush.msra.mxu0 %v775
  %859 = vmatpush.msra.mxu0 %v772
  %860 = vmatpush.msra.mxu0 %v769
  %861 = vmatpush.msra.mxu0 %v766
  %862 = vmatmul.f32.gmra.mxu0 %v777
  %v863 = vpop.f32.mrf.mxu0
  %v864 = vadd.f32 0.0, %v863
  %865 = vmatmul.f32.gmra.mxu0 %v780
  %v866 = vpop.f32.mrf.mxu0
  %v867 = vadd.f32 0.0, %v866
  %868 = vmatmul.f32.gmra.mxu0 %v783
  %v869 = vpop.f32.mrf.mxu0
  %v870 = vadd.f32 0.0, %v869
  %871 = vmatmul.f32.gmra.mxu0 %v786
  %v872 = vpop.f32.mrf.mxu0
  %v873 = vadd.f32 0.0, %v872
  %874 = vdwg.mxu0
  %v875 = vmul.f32 %v250, %v806
  %v876 = vmul.f32 %v262, %v835
  %v877 = vmul.f32 %v251, %v809
  %v878 = vmul.f32 %v263, %v838
  %v879 = vmul.f32 %v252, %v812
  %v880 = vmul.f32 %v264, %v841
  %v881 = vmul.f32 %v253, %v815
  %v882 = vmul.f32 %v265, %v844
  %v883 = vld [vmem:[%s8] sm:$0xff]
  %v884 = vld [vmem:[%s8 + $0x8] sm:$0xff]
  %v885 = vld [vmem:[%s8 + $0x10] sm:$0xff]
  %v886 = vld [vmem:[%s8 + $0x18] sm:$0xff]
  %v887 = vld [vmem:[%s8 + $0x20] sm:$0xff]
  %v888 = vld [vmem:[%s8 + $0x28] sm:$0xff]
  %v889 = vld [vmem:[%s8 + $0x30] sm:$0xff]
  %v890 = vld [vmem:[%s8 + $0x38] sm:$0xff]
  %v891 = vld [vmem:[%s8 + $0x40] sm:$0xff]
  %v892 = vld [vmem:[%s8 + $0x48] sm:$0xff]
  %v893 = vld [vmem:[%s8 + $0x50] sm:$0xff]
  %v894 = vld [vmem:[%s8 + $0x58] sm:$0xff]
  %v895 = vld [vmem:[%s8 + $0x60] sm:$0xff]
  %v896 = vld [vmem:[%s8 + $0x68] sm:$0xff]
  %v897 = vld [vmem:[%s8 + $0x70] sm:$0xff]
  %v898 = vld [vmem:[%s8 + $0x78] sm:$0xff]
  %v899 = vld [vmem:[%s8 + $0x80] sm:$0xff]
  %v900 = vld [vmem:[%s8 + $0x88] sm:$0xff]
  %v901 = vld [vmem:[%s8 + $0x90] sm:$0xff]
  %v902 = vld [vmem:[%s8 + $0x98] sm:$0xff]
  %v903 = vld [vmem:[%s8 + $0xa0] sm:$0xff]
  %v904 = vld [vmem:[%s8 + $0xa8] sm:$0xff]
  %v905 = vld [vmem:[%s8 + $0xb0] sm:$0xff]
  %v906 = vld [vmem:[%s8 + $0xb8] sm:$0xff]
  %v907 = vld [vmem:[%s8 + $0xc0] sm:$0xff]
  %v908 = vld [vmem:[%s8 + $0xc8] sm:$0xff]
  %v909 = vld [vmem:[%s8 + $0xd0] sm:$0xff]
  %v910 = vld [vmem:[%s8 + $0xd8] sm:$0xff]
  %v911 = vld [vmem:[%s8 + $0xe0] sm:$0xff]
  %v912 = vld [vmem:[%s8 + $0xe8] sm:$0xff]
  %v913 = vld [vmem:[%s8 + $0xf0] sm:$0xff]
  %v914 = vld [vmem:[%s8 + $0xf8] sm:$0xff]
  %v915 = vld [vmem:[%s8 + $0x100] sm:$0xff]
  %v916 = vld [vmem:[%s8 + $0x108] sm:$0xff]
  %v917 = vld [vmem:[%s8 + $0x110] sm:$0xff]
  %v918 = vld [vmem:[%s8 + $0x118] sm:$0xff]
  %v920 = vsel %vm239, %v864, 0
  %v923 = vsel %vm239, %v867, 0
  %v926 = vsel %vm239, %v870, 0
  %v929 = vsel %vm239, %v873, 0
  %931 = vmatpush.msra.mxu0 %v898
  %932 = vmatpush.msra.mxu0 %v897
  %933 = vmatpush.msra.mxu0 %v896
  %934 = vmatpush.msra.mxu0 %v895
  %935 = vmatpush.msra.mxu0 %v894
  %936 = vmatpush.msra.mxu0 %v893
  %937 = vmatpush.msra.mxu0 %v892
  %938 = vmatpush.msra.mxu0 %v891
  %939 = vmatpush.msra.mxu0 %v890
  %940 = vmatpush.msra.mxu0 %v889
  %941 = vmatpush.msra.mxu0 %v888
  %942 = vmatpush.msra.mxu0 %v887
  %943 = vmatpush.msra.mxu0 %v886
  %944 = vmatpush.msra.mxu0 %v885
  %945 = vmatpush.msra.mxu0 %v884
  %946 = vmatpush.msra.mxu0 %v883
  %947 = vmatmul.f32.gmra.mxu0 %v875
  %v948 = vpop.f32.mrf.mxu0
  %v949 = vadd.f32 0.0, %v948
  %950 = vmatmul.f32.gmra.mxu0 %v877
  %v951 = vpop.f32.mrf.mxu0
  %v952 = vadd.f32 0.0, %v951
  %953 = vmatmul.f32.gmra.mxu0 %v879
  %v954 = vpop.f32.mrf.mxu0
  %v955 = vadd.f32 0.0, %v954
  %956 = vmatmul.f32.gmra.mxu0 %v881
  %v957 = vpop.f32.mrf.mxu0
  %v958 = vadd.f32 0.0, %v957
  %959 = vdwg.mxu0
  %960 = vmatpush.msra.mxu0 %v914
  %961 = vmatpush.msra.mxu0 %v913
  %962 = vmatpush.msra.mxu0 %v912
  %963 = vmatpush.msra.mxu0 %v911
  %964 = vmatpush.msra.mxu0 %v910
  %965 = vmatpush.msra.mxu0 %v909
  %966 = vmatpush.msra.mxu0 %v908
  %967 = vmatpush.msra.mxu0 %v907
  %968 = vmatpush.msra.mxu0 %v906
  %969 = vmatpush.msra.mxu0 %v905
  %970 = vmatpush.msra.mxu0 %v904
  %971 = vmatpush.msra.mxu0 %v903
  %972 = vmatpush.msra.mxu0 %v902
  %973 = vmatpush.msra.mxu0 %v901
  %974 = vmatpush.msra.mxu0 %v900
  %975 = vmatpush.msra.mxu0 %v899
  %976 = vmatmul.f32.gmra.mxu0 %v876
  %v977 = vpop.f32.mrf.mxu0
  %v978 = vadd.f32 %v949, %v977
  %979 = vmatmul.f32.gmra.mxu0 %v878
  %v980 = vpop.f32.mrf.mxu0
  %v981 = vadd.f32 %v952, %v980
  %982 = vmatmul.f32.gmra.mxu0 %v880
  %v983 = vpop.f32.mrf.mxu0
  %v984 = vadd.f32 %v955, %v983
  %985 = vmatmul.f32.gmra.mxu0 %v882
  %v986 = vpop.f32.mrf.mxu0
  %v987 = vadd.f32 %v958, %v986
  %988 = vdwg.mxu0
  %989 = vmatpush.msra.mxu0 0.0
  %990 = vmatpush.msra.mxu0 0.0
  %991 = vmatpush.msra.mxu0 0.0
  %992 = vmatpush.msra.mxu0 0.0
  %993 = vmatpush.msra.mxu0 0.0
  %994 = vmatpush.msra.mxu0 0.0
  %995 = vmatpush.msra.mxu0 0.0
  %996 = vmatpush.msra.mxu0 0.0
  %997 = vmatpush.msra.mxu0 0.0
  %998 = vmatpush.msra.mxu0 0.0
  %999 = vmatpush.msra.mxu0 0.0
  %1000 = vmatpush.msra.mxu0 0.0
  %1001 = vmatpush.msra.mxu0 %v918
  %1002 = vmatpush.msra.mxu0 %v917
  %1003 = vmatpush.msra.mxu0 %v916
  %1004 = vmatpush.msra.mxu0 %v915
  %1005 = vmatmul.f32.gmra.mxu0 %v920
  %v1006 = vpop.f32.mrf.mxu0
  %v1007 = vadd.f32 %v978, %v1006
  %1008 = vmatmul.f32.gmra.mxu0 %v923
  %v1009 = vpop.f32.mrf.mxu0
  %v1010 = vadd.f32 %v981, %v1009
  %1011 = vmatmul.f32.gmra.mxu0 %v926
  %v1012 = vpop.f32.mrf.mxu0
  %v1013 = vadd.f32 %v984, %v1012
  %1014 = vmatmul.f32.gmra.mxu0 %v929
  %v1015 = vpop.f32.mrf.mxu0
  %v1016 = vadd.f32 %v987, %v1015
  %1017 = vdwg.mxu0
  %1020 = vrot.lane.b32.xlu0 %v701, 32
  %v1021 = vpop.permute.xlu0 %1020
  %1022 = vrot.lane.b32.xlu0 %v702, 32
  %v1023 = vpop.permute.xlu0 %1022
  %1026 = vst.msk [vmem:[#allocation2] sm:$0xff] %vm643, %v1021
  %1027 = vst.msk [vmem:[#allocation2 + $0x8] sm:$0xff] %vm643, %v1023
  %1028 = vst.msk [vmem:[#allocation3] sm:$0xff] %vm239, %v1007
  %1029 = vst.msk [vmem:[#allocation3 + $0x8] sm:$0xff] %vm239, %v1010
  %1030 = vst.msk [vmem:[#allocation3 + $0x10] sm:$0xff] %vm239, %v1013
  %1031 = vst.msk [vmem:[#allocation3 + $0x18] sm:$0xff] %vm239, %v1016
  %s1032 = scalar_lea.vmem %s9, 32
  %v1033 = vld [vmem:[%s1032] sm:$0xff]
  %v1034 = vld [vmem:[%s1032 + $0x8] sm:$0xff]
  %v1035 = vld [vmem:[%s1032 + $0x10] sm:$0xff]
  %v1036 = vld [vmem:[%s1032 + $0x18] sm:$0xff]
  %1037 = vst.msk [vmem:[#allocation3 + $0x20] sm:$0xff] %vm239, %v1033
  %1038 = vst.msk [vmem:[#allocation3 + $0x28] sm:$0xff] %vm239, %v1034
  %1039 = vst.msk [vmem:[#allocation3 + $0x30] sm:$0xff] %vm239, %v1035
  %1040 = vst.msk [vmem:[#allocation3 + $0x38] sm:$0xff] %vm239, %v1036
  %v1041 = vld [vmem:[#allocation2] sm:$0xff]
  %v1042 = vld [vmem:[#allocation2 + $0x8] sm:$0xff]
  %v1043 = vld [vmem:[#allocation3] sm:$0xff]
  %v1044 = vld [vmem:[#allocation3 + $0x8] sm:$0xff]
  %v1045 = vld [vmem:[#allocation3 + $0x10] sm:$0xff]
  %v1046 = vld [vmem:[#allocation3 + $0x18] sm:$0xff]
  %v1047 = vld [vmem:[#allocation3 + $0x20] sm:$0xff]
  %v1048 = vld [vmem:[#allocation3 + $0x28] sm:$0xff]
  %v1049 = vld [vmem:[#allocation3 + $0x30] sm:$0xff]
  %v1050 = vld [vmem:[#allocation3 + $0x38] sm:$0xff]
  %s1051 = scalar_lea.vmem %s10, 1
  %v1052 = vld [vmem:[%s1051] sm:$0x1]
  %v1054 = vperm.slane %v1052, 0
  %v1057 = vsel %vm244, %v1041, 0
  %v1060 = vsel %vm244, %v1042, 0
  %1062 = vmatpush.msra.mxu0 0.0
  %1063 = vmatpush.msra.mxu0 0.0
  %1064 = vmatpush.msra.mxu0 0.0
  %1065 = vmatpush.msra.mxu0 0.0
  %1066 = vmatpush.msra.mxu0 0.0
  %1067 = vmatpush.msra.mxu0 0.0
  %1068 = vmatpush.msra.mxu0 0.0
  %1069 = vmatpush.msra.mxu0 0.0
  %1070 = vmatpush.msra.mxu0 %v1050
  %1071 = vmatpush.msra.mxu0 %v1049
  %1072 = vmatpush.msra.mxu0 %v1048
  %1073 = vmatpush.msra.mxu0 %v1047
  %1074 = vmatpush.msra.mxu0 %v1046
  %1075 = vmatpush.msra.mxu0 %v1045
  %1076 = vmatpush.msra.mxu0 %v1044
  %1077 = vmatpush.msra.mxu0 %v1043
  %1078 = vmatmul.f32.gmra.mxu0 %v1057
  %v1079 = vpop.f32.mrf.mxu0
  %v1080 = vadd.f32 %v1054, %v1079
  %1081 = vmatmul.f32.gmra.mxu0 %v1060
  %v1082 = vpop.f32.mrf.mxu0
  %v1083 = vadd.f32 %v1054, %v1082
  %1084 = vdwg.mxu0
  %v1085 = vmax.f32 %v1080, 0.0
  %v1086 = vmax.f32 %v1083, 0.0
  %v1087 = vsel %vm705, %v1085, -1e+30
  %v1088 = vsel %vm706, %v1086, -1e+30
  %v1089 = vsel %vm239, %v1087, -inf
  %v1090 = vsel %vm239, %v1088, -inf
  %v1091 = vmax.f32 %v1089, %v1090
  %v1092 = vrot.slane %v1091, 4
  %v1093 = vmax.f32 %v1091, %v1092
  %v1094 = vrot.slane %v1093, 2
  %v1095 = vmax.f32 %v1093, %v1094
  %v1096 = vrot.slane %v1095, 1
  %v1097 = vmax.f32 %v1095, %v1096
  %v1098 = vadd.f32 %v718, %v1097
  %v1099 = vsel %vm721, %v1085, -1e+30
  %v1100 = vsel %vm722, %v1086, -1e+30
  %v1101 = vsel %vm239, %v1099, -inf
  %v1102 = vsel %vm239, %v1100, -inf
  %v1103 = vmax.f32 %v1101, %v1102
  %v1104 = vrot.slane %v1103, 4
  %v1105 = vmax.f32 %v1103, %v1104
  %v1106 = vrot.slane %v1105, 2
  %v1107 = vmax.f32 %v1105, %v1106
  %v1108 = vrot.slane %v1107, 1
  %v1109 = vmax.f32 %v1107, %v1108
  %v1110 = vadd.f32 %v734, %v1109
  %1111 = vmatpush.msra.mxu0 0.0
  %1112 = vmatpush.msra.mxu0 0.0
  %1113 = vmatpush.msra.mxu0 0.0
  %1114 = vmatpush.msra.mxu0 0.0
  %1115 = vmatpush.msra.mxu0 0.0
  %1116 = vmatpush.msra.mxu0 0.0
  %1117 = vmatpush.msra.mxu0 0.0
  %1118 = vmatpush.msra.mxu0 0.0
  %1119 = vmatpush.msra.mxu0 0.0
  %1120 = vmatpush.msra.mxu0 0.0
  %1121 = vmatpush.msra.mxu0 0.0
  %1122 = vmatpush.msra.mxu0 0.0
  %1123 = vmatpush.msra.mxu0 0.0
  %1124 = vmatpush.msra.mxu0 0.0
  %1125 = vmatpush.msra.mxu0 %v1086
  %1126 = vmatpush.msra.mxu0 %v1085
  %1127 = vmatmul.f32.gmra.mxu0 %v341
  %v1128 = vpop.f32.mrf.mxu0
  %v1129 = vadd.f32 0.0, %v1128
  %1130 = vmatmul.f32.gmra.mxu0 %v344
  %v1131 = vpop.f32.mrf.mxu0
  %v1132 = vadd.f32 0.0, %v1131
  %1133 = vmatmul.f32.gmra.mxu0 %v347
  %v1134 = vpop.f32.mrf.mxu0
  %v1135 = vadd.f32 0.0, %v1134
  %1136 = vmatmul.f32.gmra.mxu0 %v350
  %v1137 = vpop.f32.mrf.mxu0
  %v1138 = vadd.f32 0.0, %v1137
  %1139 = vdwg.mxu0
  %v1140 = vld [vmem:[%s7] sm:$0xff]
  %v1141 = vld [vmem:[%s7 + $0x8] sm:$0xff]
  %v1142 = vld [vmem:[%s7 + $0x10] sm:$0xff]
  %v1143 = vld [vmem:[%s7 + $0x18] sm:$0xff]
  %v1144 = vld [vmem:[%s7 + $0x20] sm:$0xff]
  %v1145 = vld [vmem:[%s7 + $0x28] sm:$0xff]
  %v1146 = vld [vmem:[%s7 + $0x30] sm:$0xff]
  %v1147 = vld [vmem:[%s7 + $0x38] sm:$0xff]
  %v1148 = vld [vmem:[%s7 + $0x40] sm:$0xff]
  %v1149 = vld [vmem:[%s7 + $0x48] sm:$0xff]
  %v1150 = vld [vmem:[%s7 + $0x50] sm:$0xff]
  %v1151 = vld [vmem:[%s7 + $0x58] sm:$0xff]
  %v1153 = vsel %vm239, %v1129, 0
  %v1156 = vsel %vm239, %v1132, 0
  %v1159 = vsel %vm239, %v1135, 0
  %v1162 = vsel %vm239, %v1138, 0
  %1164 = vmatpush.msra.mxu0 0.0
  %1165 = vmatpush.msra.mxu0 0.0
  %1166 = vmatpush.msra.mxu0 0.0
  %1167 = vmatpush.msra.mxu0 0.0
  %1168 = vmatpush.msra.mxu0 0.0
  %1169 = vmatpush.msra.mxu0 0.0
  %1170 = vmatpush.msra.mxu0 0.0
  %1171 = vmatpush.msra.mxu0 0.0
  %1172 = vmatpush.msra.mxu0 0.0
  %1173 = vmatpush.msra.mxu0 0.0
  %1174 = vmatpush.msra.mxu0 0.0
  %1175 = vmatpush.msra.mxu0 0.0
  %1176 = vmatpush.msra.mxu0 %v1149
  %1177 = vmatpush.msra.mxu0 %v1146
  %1178 = vmatpush.msra.mxu0 %v1143
  %1179 = vmatpush.msra.mxu0 %v1140
  %1180 = vmatmul.f32.gmra.mxu0 %v1153
  %v1181 = vpop.f32.mrf.mxu0
  %v1182 = vadd.f32 0.0, %v1181
  %1183 = vmatmul.f32.gmra.mxu0 %v1156
  %v1184 = vpop.f32.mrf.mxu0
  %v1185 = vadd.f32 0.0, %v1184
  %1186 = vmatmul.f32.gmra.mxu0 %v1159
  %v1187 = vpop.f32.mrf.mxu0
  %v1188 = vadd.f32 0.0, %v1187
  %1189 = vmatmul.f32.gmra.mxu0 %v1162
  %v1190 = vpop.f32.mrf.mxu0
  %v1191 = vadd.f32 0.0, %v1190
  %1192 = vdwg.mxu0
  %1193 = vmatpush.msra.mxu0 0.0
  %1194 = vmatpush.msra.mxu0 0.0
  %1195 = vmatpush.msra.mxu0 0.0
  %1196 = vmatpush.msra.mxu0 0.0
  %1197 = vmatpush.msra.mxu0 0.0
  %1198 = vmatpush.msra.mxu0 0.0
  %1199 = vmatpush.msra.mxu0 0.0
  %1200 = vmatpush.msra.mxu0 0.0
  %1201 = vmatpush.msra.mxu0 0.0
  %1202 = vmatpush.msra.mxu0 0.0
  %1203 = vmatpush.msra.mxu0 0.0
  %1204 = vmatpush.msra.mxu0 0.0
  %1205 = vmatpush.msra.mxu0 %v1150
  %1206 = vmatpush.msra.mxu0 %v1147
  %1207 = vmatpush.msra.mxu0 %v1144
  %1208 = vmatpush.msra.mxu0 %v1141
  %1209 = vmatmul.f32.gmra.mxu0 %v1153
  %v1210 = vpop.f32.mrf.mxu0
  %v1211 = vadd.f32 0.0, %v1210
  %1212 = vmatmul.f32.gmra.mxu0 %v1156
  %v1213 = vpop.f32.mrf.mxu0
  %v1214 = vadd.f32 0.0, %v1213
  %1215 = vmatmul.f32.gmra.mxu0 %v1159
  %v1216 = vpop.f32.mrf.mxu0
  %v1217 = vadd.f32 0.0, %v1216
  %1218 = vmatmul.f32.gmra.mxu0 %v1162
  %v1219 = vpop.f32.mrf.mxu0
  %v1220 = vadd.f32 0.0, %v1219
  %1221 = vdwg.mxu0
  %1222 = vmatpush.msra.mxu0 0.0
  %1223 = vmatpush.msra.mxu0 0.0
  %1224 = vmatpush.msra.mxu0 0.0
  %1225 = vmatpush.msra.mxu0 0.0
  %1226 = vmatpush.msra.mxu0 0.0
  %1227 = vmatpush.msra.mxu0 0.0
  %1228 = vmatpush.msra.mxu0 0.0
  %1229 = vmatpush.msra.mxu0 0.0
  %1230 = vmatpush.msra.mxu0 0.0
  %1231 = vmatpush.msra.mxu0 0.0
  %1232 = vmatpush.msra.mxu0 0.0
  %1233 = vmatpush.msra.mxu0 0.0
  %1234 = vmatpush.msra.mxu0 %v1151
  %1235 = vmatpush.msra.mxu0 %v1148
  %1236 = vmatpush.msra.mxu0 %v1145
  %1237 = vmatpush.msra.mxu0 %v1142
  %1238 = vmatmul.f32.gmra.mxu0 %v1153
  %v1239 = vpop.f32.mrf.mxu0
  %v1240 = vadd.f32 0.0, %v1239
  %1241 = vmatmul.f32.gmra.mxu0 %v1156
  %v1242 = vpop.f32.mrf.mxu0
  %v1243 = vadd.f32 0.0, %v1242
  %1244 = vmatmul.f32.gmra.mxu0 %v1159
  %v1245 = vpop.f32.mrf.mxu0
  %v1246 = vadd.f32 0.0, %v1245
  %1247 = vmatmul.f32.gmra.mxu0 %v1162
  %v1248 = vpop.f32.mrf.mxu0
  %v1249 = vadd.f32 0.0, %v1248
  %1250 = vdwg.mxu0
  %v1251 = vmul.f32 %v250, %v1182
  %v1252 = vmul.f32 %v262, %v1211
  %v1253 = vmul.f32 %v251, %v1185
  %v1254 = vmul.f32 %v263, %v1214
  %v1255 = vmul.f32 %v252, %v1188
  %v1256 = vmul.f32 %v264, %v1217
  %v1257 = vmul.f32 %v253, %v1191
  %v1258 = vmul.f32 %v265, %v1220
  %v1259 = vld [vmem:[%s8] sm:$0xff]
  %v1260 = vld [vmem:[%s8 + $0x8] sm:$0xff]
  %v1261 = vld [vmem:[%s8 + $0x10] sm:$0xff]
  %v1262 = vld [vmem:[%s8 + $0x18] sm:$0xff]
  %v1263 = vld [vmem:[%s8 + $0x20] sm:$0xff]
  %v1264 = vld [vmem:[%s8 + $0x28] sm:$0xff]
  %v1265 = vld [vmem:[%s8 + $0x30] sm:$0xff]
  %v1266 = vld [vmem:[%s8 + $0x38] sm:$0xff]
  %v1267 = vld [vmem:[%s8 + $0x40] sm:$0xff]
  %v1268 = vld [vmem:[%s8 + $0x48] sm:$0xff]
  %v1269 = vld [vmem:[%s8 + $0x50] sm:$0xff]
  %v1270 = vld [vmem:[%s8 + $0x58] sm:$0xff]
  %v1271 = vld [vmem:[%s8 + $0x60] sm:$0xff]
  %v1272 = vld [vmem:[%s8 + $0x68] sm:$0xff]
  %v1273 = vld [vmem:[%s8 + $0x70] sm:$0xff]
  %v1274 = vld [vmem:[%s8 + $0x78] sm:$0xff]
  %v1275 = vld [vmem:[%s8 + $0x80] sm:$0xff]
  %v1276 = vld [vmem:[%s8 + $0x88] sm:$0xff]
  %v1277 = vld [vmem:[%s8 + $0x90] sm:$0xff]
  %v1278 = vld [vmem:[%s8 + $0x98] sm:$0xff]
  %v1279 = vld [vmem:[%s8 + $0xa0] sm:$0xff]
  %v1280 = vld [vmem:[%s8 + $0xa8] sm:$0xff]
  %v1281 = vld [vmem:[%s8 + $0xb0] sm:$0xff]
  %v1282 = vld [vmem:[%s8 + $0xb8] sm:$0xff]
  %v1283 = vld [vmem:[%s8 + $0xc0] sm:$0xff]
  %v1284 = vld [vmem:[%s8 + $0xc8] sm:$0xff]
  %v1285 = vld [vmem:[%s8 + $0xd0] sm:$0xff]
  %v1286 = vld [vmem:[%s8 + $0xd8] sm:$0xff]
  %v1287 = vld [vmem:[%s8 + $0xe0] sm:$0xff]
  %v1288 = vld [vmem:[%s8 + $0xe8] sm:$0xff]
  %v1289 = vld [vmem:[%s8 + $0xf0] sm:$0xff]
  %v1290 = vld [vmem:[%s8 + $0xf8] sm:$0xff]
  %v1291 = vld [vmem:[%s8 + $0x100] sm:$0xff]
  %v1292 = vld [vmem:[%s8 + $0x108] sm:$0xff]
  %v1293 = vld [vmem:[%s8 + $0x110] sm:$0xff]
  %v1294 = vld [vmem:[%s8 + $0x118] sm:$0xff]
  %v1296 = vsel %vm239, %v1240, 0
  %v1299 = vsel %vm239, %v1243, 0
  %v1302 = vsel %vm239, %v1246, 0
  %v1305 = vsel %vm239, %v1249, 0
  %1307 = vmatpush.msra.mxu0 %v1274
  %1308 = vmatpush.msra.mxu0 %v1273
  %1309 = vmatpush.msra.mxu0 %v1272
  %1310 = vmatpush.msra.mxu0 %v1271
  %1311 = vmatpush.msra.mxu0 %v1270
  %1312 = vmatpush.msra.mxu0 %v1269
  %1313 = vmatpush.msra.mxu0 %v1268
  %1314 = vmatpush.msra.mxu0 %v1267
  %1315 = vmatpush.msra.mxu0 %v1266
  %1316 = vmatpush.msra.mxu0 %v1265
  %1317 = vmatpush.msra.mxu0 %v1264
  %1318 = vmatpush.msra.mxu0 %v1263
  %1319 = vmatpush.msra.mxu0 %v1262
  %1320 = vmatpush.msra.mxu0 %v1261
  %1321 = vmatpush.msra.mxu0 %v1260
  %1322 = vmatpush.msra.mxu0 %v1259
  %1323 = vmatmul.f32.gmra.mxu0 %v1251
  %v1324 = vpop.f32.mrf.mxu0
  %v1325 = vadd.f32 0.0, %v1324
  %1326 = vmatmul.f32.gmra.mxu0 %v1253
  %v1327 = vpop.f32.mrf.mxu0
  %v1328 = vadd.f32 0.0, %v1327
  %1329 = vmatmul.f32.gmra.mxu0 %v1255
  %v1330 = vpop.f32.mrf.mxu0
  %v1331 = vadd.f32 0.0, %v1330
  %1332 = vmatmul.f32.gmra.mxu0 %v1257
  %v1333 = vpop.f32.mrf.mxu0
  %v1334 = vadd.f32 0.0, %v1333
  %1335 = vdwg.mxu0
  %1336 = vmatpush.msra.mxu0 %v1290
  %1337 = vmatpush.msra.mxu0 %v1289
  %1338 = vmatpush.msra.mxu0 %v1288
  %1339 = vmatpush.msra.mxu0 %v1287
  %1340 = vmatpush.msra.mxu0 %v1286
  %1341 = vmatpush.msra.mxu0 %v1285
  %1342 = vmatpush.msra.mxu0 %v1284
  %1343 = vmatpush.msra.mxu0 %v1283
  %1344 = vmatpush.msra.mxu0 %v1282
  %1345 = vmatpush.msra.mxu0 %v1281
  %1346 = vmatpush.msra.mxu0 %v1280
  %1347 = vmatpush.msra.mxu0 %v1279
  %1348 = vmatpush.msra.mxu0 %v1278
  %1349 = vmatpush.msra.mxu0 %v1277
  %1350 = vmatpush.msra.mxu0 %v1276
  %1351 = vmatpush.msra.mxu0 %v1275
  %1352 = vmatmul.f32.gmra.mxu0 %v1252
  %v1353 = vpop.f32.mrf.mxu0
  %v1354 = vadd.f32 %v1325, %v1353
  %1355 = vmatmul.f32.gmra.mxu0 %v1254
  %v1356 = vpop.f32.mrf.mxu0
  %v1357 = vadd.f32 %v1328, %v1356
  %1358 = vmatmul.f32.gmra.mxu0 %v1256
  %v1359 = vpop.f32.mrf.mxu0
  %v1360 = vadd.f32 %v1331, %v1359
  %1361 = vmatmul.f32.gmra.mxu0 %v1258
  %v1362 = vpop.f32.mrf.mxu0
  %v1363 = vadd.f32 %v1334, %v1362
  %1364 = vdwg.mxu0
  %1365 = vmatpush.msra.mxu0 0.0
  %1366 = vmatpush.msra.mxu0 0.0
  %1367 = vmatpush.msra.mxu0 0.0
  %1368 = vmatpush.msra.mxu0 0.0
  %1369 = vmatpush.msra.mxu0 0.0
  %1370 = vmatpush.msra.mxu0 0.0
  %1371 = vmatpush.msra.mxu0 0.0
  %1372 = vmatpush.msra.mxu0 0.0
  %1373 = vmatpush.msra.mxu0 0.0
  %1374 = vmatpush.msra.mxu0 0.0
  %1375 = vmatpush.msra.mxu0 0.0
  %1376 = vmatpush.msra.mxu0 0.0
  %1377 = vmatpush.msra.mxu0 %v1294
  %1378 = vmatpush.msra.mxu0 %v1293
  %1379 = vmatpush.msra.mxu0 %v1292
  %1380 = vmatpush.msra.mxu0 %v1291
  %1381 = vmatmul.f32.gmra.mxu0 %v1296
  %v1382 = vpop.f32.mrf.mxu0
  %v1383 = vadd.f32 %v1354, %v1382
  %1384 = vmatmul.f32.gmra.mxu0 %v1299
  %v1385 = vpop.f32.mrf.mxu0
  %v1386 = vadd.f32 %v1357, %v1385
  %1387 = vmatmul.f32.gmra.mxu0 %v1302
  %v1388 = vpop.f32.mrf.mxu0
  %v1389 = vadd.f32 %v1360, %v1388
  %1390 = vmatmul.f32.gmra.mxu0 %v1305
  %v1391 = vpop.f32.mrf.mxu0
  %v1392 = vadd.f32 %v1363, %v1391
  %1393 = vdwg.mxu0
  %1396 = vrot.lane.b32.xlu0 %v1085, 32
  %v1397 = vpop.permute.xlu0 %1396
  %1398 = vrot.lane.b32.xlu0 %v1086, 32
  %v1399 = vpop.permute.xlu0 %1398
  %1402 = vst.msk [vmem:[#allocation2] sm:$0xff] %vm643, %v1397
  %1403 = vst.msk [vmem:[#allocation2 + $0x8] sm:$0xff] %vm643, %v1399
  %1404 = vst.msk [vmem:[#allocation3] sm:$0xff] %vm239, %v1383
  %1405 = vst.msk [vmem:[#allocation3 + $0x8] sm:$0xff] %vm239, %v1386
  %1406 = vst.msk [vmem:[#allocation3 + $0x10] sm:$0xff] %vm239, %v1389
  %1407 = vst.msk [vmem:[#allocation3 + $0x18] sm:$0xff] %vm239, %v1392
  %s1408 = scalar_lea.vmem %s9, 64
  %v1409 = vld [vmem:[%s1408] sm:$0xff]
  %v1410 = vld [vmem:[%s1408 + $0x8] sm:$0xff]
  %v1411 = vld [vmem:[%s1408 + $0x10] sm:$0xff]
  %v1412 = vld [vmem:[%s1408 + $0x18] sm:$0xff]
  %1413 = vst.msk [vmem:[#allocation3 + $0x20] sm:$0xff] %vm239, %v1409
  %1414 = vst.msk [vmem:[#allocation3 + $0x28] sm:$0xff] %vm239, %v1410
  %1415 = vst.msk [vmem:[#allocation3 + $0x30] sm:$0xff] %vm239, %v1411
  %1416 = vst.msk [vmem:[#allocation3 + $0x38] sm:$0xff] %vm239, %v1412
  %v1417 = vld [vmem:[#allocation2] sm:$0xff]
  %v1418 = vld [vmem:[#allocation2 + $0x8] sm:$0xff]
  %v1419 = vld [vmem:[#allocation3] sm:$0xff]
  %v1420 = vld [vmem:[#allocation3 + $0x8] sm:$0xff]
  %v1421 = vld [vmem:[#allocation3 + $0x10] sm:$0xff]
  %v1422 = vld [vmem:[#allocation3 + $0x18] sm:$0xff]
  %v1423 = vld [vmem:[#allocation3 + $0x20] sm:$0xff]
  %v1424 = vld [vmem:[#allocation3 + $0x28] sm:$0xff]
  %v1425 = vld [vmem:[#allocation3 + $0x30] sm:$0xff]
  %v1426 = vld [vmem:[#allocation3 + $0x38] sm:$0xff]
  %s1427 = scalar_lea.vmem %s10, 2
  %v1428 = vld [vmem:[%s1427] sm:$0x1]
  %v1430 = vperm.slane %v1428, 0
  %v1433 = vsel %vm244, %v1417, 0
  %v1436 = vsel %vm244, %v1418, 0
  %1438 = vmatpush.msra.mxu0 0.0
  %1439 = vmatpush.msra.mxu0 0.0
  %1440 = vmatpush.msra.mxu0 0.0
  %1441 = vmatpush.msra.mxu0 0.0
  %1442 = vmatpush.msra.mxu0 0.0
  %1443 = vmatpush.msra.mxu0 0.0
  %1444 = vmatpush.msra.mxu0 0.0
  %1445 = vmatpush.msra.mxu0 0.0
  %1446 = vmatpush.msra.mxu0 %v1426
  %1447 = vmatpush.msra.mxu0 %v1425
  %1448 = vmatpush.msra.mxu0 %v1424
  %1449 = vmatpush.msra.mxu0 %v1423
  %1450 = vmatpush.msra.mxu0 %v1422
  %1451 = vmatpush.msra.mxu0 %v1421
  %1452 = vmatpush.msra.mxu0 %v1420
  %1453 = vmatpush.msra.mxu0 %v1419
  %1454 = vmatmul.f32.gmra.mxu0 %v1433
  %v1455 = vpop.f32.mrf.mxu0
  %v1456 = vadd.f32 %v1430, %v1455
  %1457 = vmatmul.f32.gmra.mxu0 %v1436
  %v1458 = vpop.f32.mrf.mxu0
  %v1459 = vadd.f32 %v1430, %v1458
  %1460 = vdwg.mxu0
  %v1461 = vmax.f32 %v1456, 0.0
  %v1462 = vmax.f32 %v1459, 0.0
  %v1463 = vsel %vm705, %v1461, -1e+30
  %v1464 = vsel %vm706, %v1462, -1e+30
  %v1465 = vsel %vm239, %v1463, -inf
  %v1466 = vsel %vm239, %v1464, -inf
  %v1467 = vmax.f32 %v1465, %v1466
  %v1468 = vrot.slane %v1467, 4
  %v1469 = vmax.f32 %v1467, %v1468
  %v1470 = vrot.slane %v1469, 2
  %v1471 = vmax.f32 %v1469, %v1470
  %v1472 = vrot.slane %v1471, 1
  %v1473 = vmax.f32 %v1471, %v1472
  %v1474 = vadd.f32 %v1098, %v1473
  %v1475 = vsel %vm721, %v1461, -1e+30
  %v1476 = vsel %vm722, %v1462, -1e+30
  %v1477 = vsel %vm239, %v1475, -inf
  %v1478 = vsel %vm239, %v1476, -inf
  %v1479 = vmax.f32 %v1477, %v1478
  %v1480 = vrot.slane %v1479, 4
  %v1481 = vmax.f32 %v1479, %v1480
  %v1482 = vrot.slane %v1481, 2
  %v1483 = vmax.f32 %v1481, %v1482
  %v1484 = vrot.slane %v1483, 1
  %v1485 = vmax.f32 %v1483, %v1484
  %v1486 = vadd.f32 %v1110, %v1485
  %vm1487 = vcmask 1040384
  %v1488 = vsel %vm1487, %v1474, %v1486
  %v1489 = vld [vmem:[%s11] sm:$0xff]
  %v1490 = vld [vmem:[%s11 + $0x8] sm:$0xff]
  %v1491 = vld [vmem:[%s11 + $0x10] sm:$0xff]
  %v1492 = vld [vmem:[%s11 + $0x18] sm:$0xff]
  %v1493 = vld [vmem:[%s12] sm:$0x1]
  %v1495 = vperm.slane %v1493, 0
  %v1498 = vsel %vm239, %v1488, 0
  %1500 = vmatpush.msra.mxu0 0.0
  %1501 = vmatpush.msra.mxu0 0.0
  %1502 = vmatpush.msra.mxu0 0.0
  %1503 = vmatpush.msra.mxu0 0.0
  %1504 = vmatpush.msra.mxu0 0.0
  %1505 = vmatpush.msra.mxu0 0.0
  %1506 = vmatpush.msra.mxu0 0.0
  %1507 = vmatpush.msra.mxu0 0.0
  %1508 = vmatpush.msra.mxu0 0.0
  %1509 = vmatpush.msra.mxu0 0.0
  %1510 = vmatpush.msra.mxu0 0.0
  %1511 = vmatpush.msra.mxu0 0.0
  %1512 = vmatpush.msra.mxu0 %v1492
  %1513 = vmatpush.msra.mxu0 %v1491
  %1514 = vmatpush.msra.mxu0 %v1490
  %1515 = vmatpush.msra.mxu0 %v1489
  %1516 = vmatmul.f32.gmra.mxu0 %v1498
  %v1517 = vpop.f32.mrf.mxu0
  %v1518 = vadd.f32 %v1495, %v1517
  %1519 = vdwg.mxu0
  %v1520 = vmax.f32 %v1518, 0.0
  %v1521 = vld [vmem:[%s13] sm:$0x1]
  %v1523 = vperm.slane %v1521, 0
  %v1525 = vmul.f32 %v1520, %v1523
  %vm1526 = vcmask 254976
  %v1527 = vsel %vm1526, %v1525, 0.0
  %1528 = vadd.xlane.f32.xlu0 %v1527
  %v1529 = vpop.xlane.xlu0 %1528
  %v1530 = vld [vmem:[#allocation4] sm:$0x1]
  %v1532 = vperm.slane %v1530, 0
  %v1534 = vadd.f32 %v1529, %v1532
  %vm1535 = vcmask 1024
  %1536 = vst.msk [vmem:[%s15] sm:$0x3] %vm1535, %v1534
  // Predicated region
  $region62: #{tpu_custom_call.1} parent=0 // pred_check
    _
  $region63: #{tpu_custom_call.1} parent=0 // pred_check_branch
    %1538 = sbr.rel (0) target = $region65
  $region64: #{tpu_custom_call.1} parent=0 // pred_region
    _
  $region65: #{tpu_custom_call.1} parent=0 // pred_fallthru
    _
  // Predicated region
  $region66: #{tpu_custom_call.1} parent=0 // pred_check
    _
  $region67: #{tpu_custom_call.1} parent=0 // pred_check_branch
    %1540 = sbr.rel (0) target = $region69
  $region68: #{tpu_custom_call.1} parent=0 // pred_region
    _
  $region69: #{tpu_custom_call.1} parent=0 // pred_fallthru
    _

</llo_original>
